<compile_context>
chip_gen: v7x
topology: tpu7x:2x2x1
jax: 0.10.0
libtpu: 0.0.40
codegen_flags: <defaults>
</compile_context>

<pallas_src>
import functools

import jax
import jax.numpy as jnp
from jax import lax
from jax.experimental import pallas as pl
from jax.experimental.pallas import tpu as pltpu


# --------------------------------------------------------------------------
# Fused attention block kernel: QKV projection + per-head relative attention
# + output projection, one batch element per grid step.
# --------------------------------------------------------------------------
def _attn_block_kernel(x_ref, wqkv_ref, bqkv_ref, wo_ref, bo_ref, bias_ref,
                       o_ref, acc_ref, *, n_heads, key_dim, value_dim, scale):
    # x_ref    : (1, S, Din)        bf16
    # wqkv_ref : (Din, 2K+V)        bf16   (wq | wk | wv fused along Dout)
    # bqkv_ref : (1, 2K+V)          f32
    # wo_ref   : (V, Dout)          bf16
    # bo_ref   : (1, Dout)          f32
    # bias_ref : (H, S, S)          f32    (relative bias + additive mask)
    # o_ref    : (1, S, Dout)       f32
    # acc_ref  : (S, V) VMEM scratch f32   (lane-dense per-head output slab)
    x = x_ref[0]                                        # (S, Din) bf16

    # Fused QKV projection (single MXU matmul, f32 accumulation).
    qkv = jnp.dot(x, wqkv_ref[...],
                  preferred_element_type=jnp.float32) + bqkv_ref[...]

    dk = key_dim // n_heads
    dv = value_dim // n_heads
    q_all = qkv[:, :key_dim]                            # (S, K) f32
    k_all = qkv[:, key_dim:2 * key_dim]                 # (S, K) f32
    v_all = qkv[:, 2 * key_dim:]                        # (S, V) f32

    for h in range(n_heads):
        qh = q_all[:, h * dk:(h + 1) * dk].astype(jnp.bfloat16)
        kh = k_all[:, h * dk:(h + 1) * dk].astype(jnp.bfloat16)
        vh = v_all[:, h * dv:(h + 1) * dv].astype(jnp.bfloat16)

        # q · k^T without an explicit transpose: contract the feature dims.
        s = lax.dot_general(qh, kh, (((1,), (1,)), ((), ())),
                            preferred_element_type=jnp.float32)
        s = s * scale + bias_ref[h]                     # f32 score path

        # softmax kept entirely in f32 (v5e has no bf16 VPU/EUP)
        m = jnp.max(s, axis=-1, keepdims=True)
        p = jnp.exp(s - m)
        denom = jnp.sum(p, axis=-1, keepdims=True)
        oh = jnp.dot(p.astype(jnp.bfloat16), vh,
                     preferred_element_type=jnp.float32)
        oh = oh * pl.reciprocal(denom, approx=True)

        acc_ref[:, h * dv:(h + 1) * dv] = oh            # build (S, H*dv) slab

    # Output projection fused into the same kernel.
    o = acc_ref[...]                                    # (S, V) f32
    out = jnp.dot(o.astype(jnp.bfloat16), wo_ref[...],
                  preferred_element_type=jnp.float32) + bo_ref[...]
    o_ref[0] = out


def attn_block_pallas(x, wqkv, bqkv, wo, bo, bias_hss, *,
                      n_heads, key_dim, value_dim):
    """One relative-attention block: softmax(q k^T/sqrt(dk)+bias) v @ wo."""
    B, S, Din = x.shape
    Dqkv = wqkv.shape[1]
    Dout = wo.shape[1]
    H = n_heads
    scale = 1.0 / float(key_dim // n_heads) ** 0.5

    kernel = functools.partial(_attn_block_kernel, n_heads=n_heads,
                               key_dim=key_dim, value_dim=value_dim,
                               scale=scale)
    return pl.pallas_call(
        kernel,
        out_shape=jax.ShapeDtypeStruct((B, S, Dout), jnp.float32),
        grid=(B,),
        in_specs=[
            pl.BlockSpec((1, S, Din), lambda b: (b, 0, 0)),
            pl.BlockSpec((Din, Dqkv), lambda b: (0, 0)),        # resident
            pl.BlockSpec((1, Dqkv), lambda b: (0, 0)),          # resident
            pl.BlockSpec((value_dim, Dout), lambda b: (0, 0)),  # resident
            pl.BlockSpec((1, Dout), lambda b: (0, 0)),          # resident
            pl.BlockSpec((H, S, S), lambda b: (0, 0, 0)),       # resident bias
        ],
        out_specs=pl.BlockSpec((1, S, Dout), lambda b: (b, 0, 0)),
        scratch_shapes=[pltpu.VMEM((S, value_dim), jnp.float32)],
        compiler_params=pltpu.CompilerParams(
            dimension_semantics=("parallel",)),
    )(x.astype(jnp.bfloat16),
      wqkv.astype(jnp.bfloat16),
      bqkv.reshape(1, Dqkv).astype(jnp.float32),
      wo.astype(jnp.bfloat16),
      bo.reshape(1, Dout).astype(jnp.float32),
      bias_hss.astype(jnp.float32))


# --------------------------------------------------------------------------
# Final linear (logits) kernel — full-M (or 512-row) tiles, padded, not asserted
# --------------------------------------------------------------------------
def _linear_kernel(x_ref, w_ref, b_ref, o_ref):
    o_ref[...] = (
        jnp.dot(x_ref[...], w_ref[...], preferred_element_type=jnp.float32)
        + b_ref[...]
    )


def linear_pallas(x2d, w, b, tm=None):
    """y = x2d @ w + b, row-tiled Pallas matmul (bf16 operands, f32 accum)."""
    M, Din = x2d.shape
    Dout = w.shape[1]
    if tm is None:
        tm = M if M <= 512 else 512
    Mp = pl.cdiv(M, tm) * tm
    x_p = x2d if Mp == M else jnp.pad(x2d, ((0, Mp - M), (0, 0)))
    out = pl.pallas_call(
        _linear_kernel,
        out_shape=jax.ShapeDtypeStruct((Mp, Dout), jnp.float32),
        grid=(Mp // tm,),
        in_specs=[
            pl.BlockSpec((tm, Din), lambda i: (i, 0)),
            pl.BlockSpec((Din, Dout), lambda i: (0, 0)),
            pl.BlockSpec((1, Dout), lambda i: (0, 0)),
        ],
        out_specs=pl.BlockSpec((tm, Dout), lambda i: (i, 0)),
        compiler_params=pltpu.CompilerParams(
            dimension_semantics=("parallel",)),
    )(x_p.astype(jnp.bfloat16), w.astype(jnp.bfloat16),
      b.reshape(1, Dout).astype(jnp.float32))
    return out if Mp == M else out[:M]


# --------------------------------------------------------------------------
# Relative-position bias matrices (small (H,S,S), built in plain JAX glue)
# --------------------------------------------------------------------------
def make_global_bias(table, S, cutoff):
    # table: (H, 2*cutoff+1)
    i = jnp.arange(S)[:, None]
    j = jnp.arange(S)[None, :]
    idx = jnp.clip(j - i, -cutoff, cutoff) + cutoff
    return table[:, idx]  # (H, S, S)


def make_local_bias(table, S, look_back, look_forward):
    # table: (H, look_back + look_forward + 1)
    i = jnp.arange(S)[:, None]
    j = jnp.arange(S)[None, :]
    rel = j - i
    in_window = (rel >= -look_back) & (rel <= look_forward)
    idx = jnp.clip(rel, -look_back, look_forward) + look_back
    bias = table[:, idx]
    return jnp.where(in_window[None, :, :], bias, -1e9)


def make_causal_bias(table, S, cutoff):
    # table: (H, 2*cutoff+1), causal (predictive) mask
    i = jnp.arange(S)[:, None]
    j = jnp.arange(S)[None, :]
    rel = j - i
    causal = rel <= 0
    idx = jnp.clip(rel, -cutoff, cutoff) + cutoff
    bias = table[:, idx]
    return jnp.where(causal[None, :, :], bias, -1e9)


# --------------------------------------------------------------------------
# Parameter construction (deterministic, synthetic; QKV stored fused)
# --------------------------------------------------------------------------
def _init_linear(key, din, dout):
    return (0.02 * jax.random.normal(key, (din, dout), jnp.float32),
            jnp.zeros((dout,), jnp.float32))


def init_attn_params(key, in_dim, key_dim, value_dim, out_dim, n_heads, n_rel):
    ks = jax.random.split(key, 3)
    wqkv, bqkv = _init_linear(ks[0], in_dim, 2 * key_dim + value_dim)
    wo, bo = _init_linear(ks[1], value_dim, out_dim)
    rel = 0.02 * jax.random.normal(ks[2], (n_heads, n_rel), jnp.float32)
    return dict(wqkv=wqkv, bqkv=bqkv, wo=wo, bo=bo, rel=rel)


def init_parallel_model(key, embedding_dim, key_dim, value_dim, n_heads,
                        local_range, relative_cutoff, vocab=240):
    ks = jax.random.split(key, 5)
    params = {}
    params["embedding"] = 0.02 * jax.random.normal(
        ks[0], (vocab, embedding_dim), jnp.float32)
    params["local"] = init_attn_params(
        ks[1], embedding_dim, key_dim, value_dim, embedding_dim, n_heads,
        local_range[0] + local_range[1] + 1)
    params["global"] = init_attn_params(
        ks[2], embedding_dim, key_dim, value_dim, embedding_dim, n_heads,
        2 * relative_cutoff + 1)
    params["pred"] = init_attn_params(
        ks[3], 2 * embedding_dim, key_dim, value_dim, embedding_dim, n_heads,
        2 * relative_cutoff + 1)
    params["out_w"], params["out_b"] = _init_linear(ks[4], embedding_dim, vocab)
    return params


# --------------------------------------------------------------------------
# Full forward pass (matches ParallelModel.forward structure)
# --------------------------------------------------------------------------
def parallel_model_forward(params, xs, *, n_heads, local_range, relative_cutoff):
    B, S = xs.shape
    emb = params["embedding"][xs]                      # nn.Embedding lookup (glue)
    emb_bf16 = emb.astype(jnp.bfloat16)                # single bf16 cast, reused

    local_bias = make_local_bias(params["local"]["rel"], S,
                                 local_range[0], local_range[1])
    global_bias = make_global_bias(params["global"]["rel"], S, relative_cutoff)
    pred_bias = make_causal_bias(params["pred"]["rel"], S, relative_cutoff)

    def run_block(p, x, bias):
        value_dim = p["wo"].shape[0]
        key_dim = (p["wqkv"].shape[1] - value_dim) // 2
        return attn_block_pallas(x, p["wqkv"], p["bqkv"], p["wo"], p["bo"],
                                 bias, n_heads=n_heads,
                                 key_dim=key_dim, value_dim=value_dim)

    loc = run_block(params["local"], emb_bf16, local_bias)       # (B, S, E)
    glo = run_block(params["global"], emb_bf16, global_bias)     # (B, S, E)
    cat = jnp.concatenate([loc, glo], axis=-1)                   # (B, S, 2E)
    pred = run_block(params["pred"], cat.astype(jnp.bfloat16), pred_bias)

    E = pred.shape[-1]
    logits = linear_pallas(pred.reshape(B * S, E), params["out_w"],
                           params["out_b"])
    return logits.reshape(B, S, -1)                    # (B, S, 240)


# --------------------------------------------------------------------------
if __name__ == "__main__":
    # small shapes consistent with the module's constructor
    B, S = 2, 16
    embedding_dim = 32
    key_dim = 16
    value_dim = 32
    n_heads = 4
    local_range = (4, 4)
    relative_cutoff = 8
    vocab = 240

    root = jax.random.PRNGKey(0)
    k_param, k_data = jax.random.split(root)
    params = init_parallel_model(k_param, embedding_dim, key_dim, value_dim,
                                 n_heads, local_range, relative_cutoff, vocab)
    xs = jax.random.randint(k_data, (B, S), 0, vocab, dtype=jnp.int32)

    fwd = jax.jit(functools.partial(parallel_model_forward,
                                    n_heads=n_heads,
                                    local_range=local_range,
                                    relative_cutoff=relative_cutoff))
    out = fwd(params, xs)
    jax.block_until_ready(out)
    assert out.shape == (B, S, vocab), out.shape
    assert bool(jnp.all(jnp.isfinite(out)))
    print("KERNEL_OK")
</pallas_src>

<mosaic_0001>
module attributes {stable_mosaic.version = 11 : i64} {
  func.func @_attn_block_kernel(%arg0: i32, %arg1: memref<1x16x32xbf16, #tpu.memory_space<vmem>>, %arg2: memref<32x64xbf16, #tpu.memory_space<vmem>>, %arg3: memref<1x64xf32, #tpu.memory_space<vmem>>, %arg4: memref<32x32xbf16, #tpu.memory_space<vmem>>, %arg5: memref<1x32xf32, #tpu.memory_space<vmem>>, %arg6: memref<4x16x16xf32, #tpu.memory_space<vmem>>, %arg7: memref<1x16x32xf32, #tpu.memory_space<vmem>>, %arg8: memref<16x32xf32, #tpu.memory_space<vmem>>) attributes {dimension_semantics = [#tpu.dimension_semantics<parallel>], iteration_bounds = array<i64: 2>, scalar_prefetch = 0 : i64, scratch_operands = 1 : i64, tpu.core_type = #tpu.core_type<tc>, window_params = [{transform_indices = @transform_0, window_bounds = array<i64: 1, 16, 32>}, {pipeline_mode = #tpu.pipeline_mode<synchronous>, transform_indices = @transform_1, window_bounds = array<i64: 32, 64>}, {pipeline_mode = #tpu.pipeline_mode<synchronous>, transform_indices = @transform_2, window_bounds = array<i64: 1, 64>}, {pipeline_mode = #tpu.pipeline_mode<synchronous>, transform_indices = @transform_3, window_bounds = array<i64: 32, 32>}, {pipeline_mode = #tpu.pipeline_mode<synchronous>, transform_indices = @transform_4, window_bounds = array<i64: 1, 32>}, {pipeline_mode = #tpu.pipeline_mode<synchronous>, transform_indices = @transform_5, window_bounds = array<i64: 4, 16, 16>}, {transform_indices = @transform_6, window_bounds = array<i64: 1, 16, 32>}]} {
    %c0 = arith.constant 0 : index
    %c0_0 = arith.constant 0 : index
    %c0_1 = arith.constant 0 : index
    %0 = vector.load %arg1[%c0, %c0_0, %c0_1] : memref<1x16x32xbf16, #tpu.memory_space<vmem>>, vector<1x16x32xbf16>
    %1 = vector.shape_cast %0 : vector<1x16x32xbf16> to vector<16x32xbf16>
    %c0_2 = arith.constant 0 : index
    %c0_3 = arith.constant 0 : index
    %2 = vector.load %arg2[%c0_2, %c0_3] : memref<32x64xbf16, #tpu.memory_space<vmem>>, vector<32x64xbf16>
    %cst = arith.constant dense<0.000000e+00> : vector<16x64xf32>
    %3 = tpu.matmul %1, %2, %cst {dimension_numbers = #tpu.dot_dimension_numbers<[1], [0], [0], [1], [0, 0, 1, 1], [], []>} : vector<16x32xbf16>, vector<32x64xbf16>, vector<16x64xf32> -> vector<16x64xf32>
    %c0_4 = arith.constant 0 : index
    %c0_5 = arith.constant 0 : index
    %4 = vector.load %arg3[%c0_4, %c0_5] : memref<1x64xf32, #tpu.memory_space<vmem>>, vector<1x64xf32>
    %5 = vector.broadcast %4 : vector<1x64xf32> to vector<16x64xf32>
    %6 = arith.addf %3, %5 : vector<16x64xf32>
    %7 = vector.extract_strided_slice %6 {offsets = [0, 0], sizes = [16, 16], strides = [1, 1]} : vector<16x64xf32> to vector<16x16xf32>
    %8 = vector.extract_strided_slice %6 {offsets = [0, 16], sizes = [16, 16], strides = [1, 1]} : vector<16x64xf32> to vector<16x16xf32>
    %9 = vector.extract_strided_slice %6 {offsets = [0, 32], sizes = [16, 32], strides = [1, 1]} : vector<16x64xf32> to vector<16x32xf32>
    %10 = vector.extract_strided_slice %7 {offsets = [0, 0], sizes = [16, 4], strides = [1, 1]} : vector<16x16xf32> to vector<16x4xf32>
    %11 = arith.truncf %10 : vector<16x4xf32> to vector<16x4xbf16>
    %12 = vector.extract_strided_slice %8 {offsets = [0, 0], sizes = [16, 4], strides = [1, 1]} : vector<16x16xf32> to vector<16x4xf32>
    %13 = arith.truncf %12 : vector<16x4xf32> to vector<16x4xbf16>
    %14 = vector.extract_strided_slice %9 {offsets = [0, 0], sizes = [16, 8], strides = [1, 1]} : vector<16x32xf32> to vector<16x8xf32>
    %15 = arith.truncf %14 : vector<16x8xf32> to vector<16x8xbf16>
    %cst_6 = arith.constant dense<0.000000e+00> : vector<16x16xf32>
    %16 = tpu.matmul %11, %13, %cst_6 {dimension_numbers = #tpu.dot_dimension_numbers<[1], [1], [0], [0], [0, 0, 1, 0], [], []>} : vector<16x4xbf16>, vector<16x4xbf16>, vector<16x16xf32> -> vector<16x16xf32>
    %cst_7 = arith.constant 5.000000e-01 : f32
    %17 = vector.broadcast %cst_7 : f32 to vector<16x16xf32>
    %18 = arith.mulf %16, %17 : vector<16x16xf32>
    %c0_8 = arith.constant 0 : index
    %c0_9 = arith.constant 0 : index
    %c0_10 = arith.constant 0 : index
    %19 = vector.load %arg6[%c0_8, %c0_9, %c0_10] : memref<4x16x16xf32, #tpu.memory_space<vmem>>, vector<1x16x16xf32>
    %20 = vector.shape_cast %19 : vector<1x16x16xf32> to vector<16x16xf32>
    %21 = arith.addf %18, %20 : vector<16x16xf32>
    %cst_11 = arith.constant dense<0xFF800000> : vector<16xf32>
    %22 = vector.multi_reduction <maximumf>, %21, %cst_11 [1] : vector<16x16xf32> to vector<16xf32>
    %23 = vector.shape_cast %22 : vector<16xf32> to vector<16x1xf32>
    %24 = vector.broadcast %23 : vector<16x1xf32> to vector<16x16xf32>
    %25 = arith.subf %21, %24 : vector<16x16xf32>
    %26 = math.exp %25 : vector<16x16xf32>
    %cst_12 = arith.constant dense<0.000000e+00> : vector<16xf32>
    %27 = vector.multi_reduction <add>, %26, %cst_12 [1] : vector<16x16xf32> to vector<16xf32>
    %28 = vector.shape_cast %27 : vector<16xf32> to vector<16x1xf32>
    %29 = arith.truncf %26 : vector<16x16xf32> to vector<16x16xbf16>
    %cst_13 = arith.constant dense<0.000000e+00> : vector<16x8xf32>
    %30 = tpu.matmul %29, %15, %cst_13 {dimension_numbers = #tpu.dot_dimension_numbers<[1], [0], [0], [1], [0, 0, 1, 1], [], []>} : vector<16x16xbf16>, vector<16x8xbf16>, vector<16x8xf32> -> vector<16x8xf32>
    %31 = tpu.reciprocal %28 {approx = true} : vector<16x1xf32> -> vector<16x1xf32>
    %32 = vector.broadcast %31 : vector<16x1xf32> to vector<16x8xf32>
    %33 = arith.mulf %30, %32 : vector<16x8xf32>
    %c0_14 = arith.constant 0 : index
    %c0_15 = arith.constant 0 : index
    %34 = vector.load %arg8[%c0_14, %c0_15] : memref<16x32xf32, #tpu.memory_space<vmem>>, vector<16x8xf32>
    tpu.vector_store %arg8[%c0_14, %c0_15], %33 {strides = array<i32>} : memref<16x32xf32, #tpu.memory_space<vmem>>, vector<16x8xf32>,
    %35 = vector.extract_strided_slice %7 {offsets = [0, 4], sizes = [16, 4], strides = [1, 1]} : vector<16x16xf32> to vector<16x4xf32>
    %36 = arith.truncf %35 : vector<16x4xf32> to vector<16x4xbf16>
    %37 = vector.extract_strided_slice %8 {offsets = [0, 4], sizes = [16, 4], strides = [1, 1]} : vector<16x16xf32> to vector<16x4xf32>
    %38 = arith.truncf %37 : vector<16x4xf32> to vector<16x4xbf16>
    %39 = vector.extract_strided_slice %9 {offsets = [0, 8], sizes = [16, 8], strides = [1, 1]} : vector<16x32xf32> to vector<16x8xf32>
    %40 = arith.truncf %39 : vector<16x8xf32> to vector<16x8xbf16>
    %cst_16 = arith.constant dense<0.000000e+00> : vector<16x16xf32>
    %41 = tpu.matmul %36, %38, %cst_16 {dimension_numbers = #tpu.dot_dimension_numbers<[1], [1], [0], [0], [0, 0, 1, 0], [], []>} : vector<16x4xbf16>, vector<16x4xbf16>, vector<16x16xf32> -> vector<16x16xf32>
    %cst_17 = arith.constant 5.000000e-01 : f32
    %42 = vector.broadcast %cst_17 : f32 to vector<16x16xf32>
    %43 = arith.mulf %41, %42 : vector<16x16xf32>
    %c1 = arith.constant 1 : index
    %c0_18 = arith.constant 0 : index
    %c0_19 = arith.constant 0 : index
    %44 = vector.load %arg6[%c1, %c0_18, %c0_19] : memref<4x16x16xf32, #tpu.memory_space<vmem>>, vector<1x16x16xf32>
    %45 = vector.shape_cast %44 : vector<1x16x16xf32> to vector<16x16xf32>
    %46 = arith.addf %43, %45 : vector<16x16xf32>
    %cst_20 = arith.constant dense<0xFF800000> : vector<16xf32>
    %47 = vector.multi_reduction <maximumf>, %46, %cst_20 [1] : vector<16x16xf32> to vector<16xf32>
    %48 = vector.shape_cast %47 : vector<16xf32> to vector<16x1xf32>
    %49 = vector.broadcast %48 : vector<16x1xf32> to vector<16x16xf32>
    %50 = arith.subf %46, %49 : vector<16x16xf32>
    %51 = math.exp %50 : vector<16x16xf32>
    %cst_21 = arith.constant dense<0.000000e+00> : vector<16xf32>
    %52 = vector.multi_reduction <add>, %51, %cst_21 [1] : vector<16x16xf32> to vector<16xf32>
    %53 = vector.shape_cast %52 : vector<16xf32> to vector<16x1xf32>
    %54 = arith.truncf %51 : vector<16x16xf32> to vector<16x16xbf16>
    %cst_22 = arith.constant dense<0.000000e+00> : vector<16x8xf32>
    %55 = tpu.matmul %54, %40, %cst_22 {dimension_numbers = #tpu.dot_dimension_numbers<[1], [0], [0], [1], [0, 0, 1, 1], [], []>} : vector<16x16xbf16>, vector<16x8xbf16>, vector<16x8xf32> -> vector<16x8xf32>
    %56 = tpu.reciprocal %53 {approx = true} : vector<16x1xf32> -> vector<16x1xf32>
    %57 = vector.broadcast %56 : vector<16x1xf32> to vector<16x8xf32>
    %58 = arith.mulf %55, %57 : vector<16x8xf32>
    %c0_23 = arith.constant 0 : index
    %c8 = arith.constant 8 : index
    %59 = vector.load %arg8[%c0_23, %c8] : memref<16x32xf32, #tpu.memory_space<vmem>>, vector<16x8xf32>
    tpu.vector_store %arg8[%c0_23, %c8], %58 {strides = array<i32>} : memref<16x32xf32, #tpu.memory_space<vmem>>, vector<16x8xf32>,
    %60 = vector.extract_strided_slice %7 {offsets = [0, 8], sizes = [16, 4], strides = [1, 1]} : vector<16x16xf32> to vector<16x4xf32>
    %61 = arith.truncf %60 : vector<16x4xf32> to vector<16x4xbf16>
    %62 = vector.extract_strided_slice %8 {offsets = [0, 8], sizes = [16, 4], strides = [1, 1]} : vector<16x16xf32> to vector<16x4xf32>
    %63 = arith.truncf %62 : vector<16x4xf32> to vector<16x4xbf16>
    %64 = vector.extract_strided_slice %9 {offsets = [0, 16], sizes = [16, 8], strides = [1, 1]} : vector<16x32xf32> to vector<16x8xf32>
    %65 = arith.truncf %64 : vector<16x8xf32> to vector<16x8xbf16>
    %cst_24 = arith.constant dense<0.000000e+00> : vector<16x16xf32>
    %66 = tpu.matmul %61, %63, %cst_24 {dimension_numbers = #tpu.dot_dimension_numbers<[1], [1], [0], [0], [0, 0, 1, 0], [], []>} : vector<16x4xbf16>, vector<16x4xbf16>, vector<16x16xf32> -> vector<16x16xf32>
    %cst_25 = arith.constant 5.000000e-01 : f32
    %67 = vector.broadcast %cst_25 : f32 to vector<16x16xf32>
    %68 = arith.mulf %66, %67 : vector<16x16xf32>
    %c2 = arith.constant 2 : index
    %c0_26 = arith.constant 0 : index
    %c0_27 = arith.constant 0 : index
    %69 = vector.load %arg6[%c2, %c0_26, %c0_27] : memref<4x16x16xf32, #tpu.memory_space<vmem>>, vector<1x16x16xf32>
    %70 = vector.shape_cast %69 : vector<1x16x16xf32> to vector<16x16xf32>
    %71 = arith.addf %68, %70 : vector<16x16xf32>
    %cst_28 = arith.constant dense<0xFF800000> : vector<16xf32>
    %72 = vector.multi_reduction <maximumf>, %71, %cst_28 [1] : vector<16x16xf32> to vector<16xf32>
    %73 = vector.shape_cast %72 : vector<16xf32> to vector<16x1xf32>
    %74 = vector.broadcast %73 : vector<16x1xf32> to vector<16x16xf32>
    %75 = arith.subf %71, %74 : vector<16x16xf32>
    %76 = math.exp %75 : vector<16x16xf32>
    %cst_29 = arith.constant dense<0.000000e+00> : vector<16xf32>
    %77 = vector.multi_reduction <add>, %76, %cst_29 [1] : vector<16x16xf32> to vector<16xf32>
    %78 = vector.shape_cast %77 : vector<16xf32> to vector<16x1xf32>
    %79 = arith.truncf %76 : vector<16x16xf32> to vector<16x16xbf16>
    %cst_30 = arith.constant dense<0.000000e+00> : vector<16x8xf32>
    %80 = tpu.matmul %79, %65, %cst_30 {dimension_numbers = #tpu.dot_dimension_numbers<[1], [0], [0], [1], [0, 0, 1, 1], [], []>} : vector<16x16xbf16>, vector<16x8xbf16>, vector<16x8xf32> -> vector<16x8xf32>
    %81 = tpu.reciprocal %78 {approx = true} : vector<16x1xf32> -> vector<16x1xf32>
    %82 = vector.broadcast %81 : vector<16x1xf32> to vector<16x8xf32>
    %83 = arith.mulf %80, %82 : vector<16x8xf32>
    %c0_31 = arith.constant 0 : index
    %c16 = arith.constant 16 : index
    %84 = vector.load %arg8[%c0_31, %c16] : memref<16x32xf32, #tpu.memory_space<vmem>>, vector<16x8xf32>
    tpu.vector_store %arg8[%c0_31, %c16], %83 {strides = array<i32>} : memref<16x32xf32, #tpu.memory_space<vmem>>, vector<16x8xf32>,
    %85 = vector.extract_strided_slice %7 {offsets = [0, 12], sizes = [16, 4], strides = [1, 1]} : vector<16x16xf32> to vector<16x4xf32>
    %86 = arith.truncf %85 : vector<16x4xf32> to vector<16x4xbf16>
    %87 = vector.extract_strided_slice %8 {offsets = [0, 12], sizes = [16, 4], strides = [1, 1]} : vector<16x16xf32> to vector<16x4xf32>
    %88 = arith.truncf %87 : vector<16x4xf32> to vector<16x4xbf16>
    %89 = vector.extract_strided_slice %9 {offsets = [0, 24], sizes = [16, 8], strides = [1, 1]} : vector<16x32xf32> to vector<16x8xf32>
    %90 = arith.truncf %89 : vector<16x8xf32> to vector<16x8xbf16>
    %cst_32 = arith.constant dense<0.000000e+00> : vector<16x16xf32>
    %91 = tpu.matmul %86, %88, %cst_32 {dimension_numbers = #tpu.dot_dimension_numbers<[1], [1], [0], [0], [0, 0, 1, 0], [], []>} : vector<16x4xbf16>, vector<16x4xbf16>, vector<16x16xf32> -> vector<16x16xf32>
    %cst_33 = arith.constant 5.000000e-01 : f32
    %92 = vector.broadcast %cst_33 : f32 to vector<16x16xf32>
    %93 = arith.mulf %91, %92 : vector<16x16xf32>
    %c3 = arith.constant 3 : index
    %c0_34 = arith.constant 0 : index
    %c0_35 = arith.constant 0 : index
    %94 = vector.load %arg6[%c3, %c0_34, %c0_35] : memref<4x16x16xf32, #tpu.memory_space<vmem>>, vector<1x16x16xf32>
    %95 = vector.shape_cast %94 : vector<1x16x16xf32> to vector<16x16xf32>
    %96 = arith.addf %93, %95 : vector<16x16xf32>
    %cst_36 = arith.constant dense<0xFF800000> : vector<16xf32>
    %97 = vector.multi_reduction <maximumf>, %96, %cst_36 [1] : vector<16x16xf32> to vector<16xf32>
    %98 = vector.shape_cast %97 : vector<16xf32> to vector<16x1xf32>
    %99 = vector.broadcast %98 : vector<16x1xf32> to vector<16x16xf32>
    %100 = arith.subf %96, %99 : vector<16x16xf32>
    %101 = math.exp %100 : vector<16x16xf32>
    %cst_37 = arith.constant dense<0.000000e+00> : vector<16xf32>
    %102 = vector.multi_reduction <add>, %101, %cst_37 [1] : vector<16x16xf32> to vector<16xf32>
    %103 = vector.shape_cast %102 : vector<16xf32> to vector<16x1xf32>
    %104 = arith.truncf %101 : vector<16x16xf32> to vector<16x16xbf16>
    %cst_38 = arith.constant dense<0.000000e+00> : vector<16x8xf32>
    %105 = tpu.matmul %104, %90, %cst_38 {dimension_numbers = #tpu.dot_dimension_numbers<[1], [0], [0], [1], [0, 0, 1, 1], [], []>} : vector<16x16xbf16>, vector<16x8xbf16>, vector<16x8xf32> -> vector<16x8xf32>
    %106 = tpu.reciprocal %103 {approx = true} : vector<16x1xf32> -> vector<16x1xf32>
    %107 = vector.broadcast %106 : vector<16x1xf32> to vector<16x8xf32>
    %108 = arith.mulf %105, %107 : vector<16x8xf32>
    %c0_39 = arith.constant 0 : index
    %c24 = arith.constant 24 : index
    %109 = vector.load %arg8[%c0_39, %c24] : memref<16x32xf32, #tpu.memory_space<vmem>>, vector<16x8xf32>
    tpu.vector_store %arg8[%c0_39, %c24], %108 {strides = array<i32>} : memref<16x32xf32, #tpu.memory_space<vmem>>, vector<16x8xf32>,
    %c0_40 = arith.constant 0 : index
    %c0_41 = arith.constant 0 : index
    %110 = vector.load %arg8[%c0_40, %c0_41] : memref<16x32xf32, #tpu.memory_space<vmem>>, vector<16x32xf32>
    %111 = arith.truncf %110 : vector<16x32xf32> to vector<16x32xbf16>
    %c0_42 = arith.constant 0 : index
    %c0_43 = arith.constant 0 : index
    %112 = vector.load %arg4[%c0_42, %c0_43] : memref<32x32xbf16, #tpu.memory_space<vmem>>, vector<32x32xbf16>
    %cst_44 = arith.constant dense<0.000000e+00> : vector<16x32xf32>
    %113 = tpu.matmul %111, %112, %cst_44 {dimension_numbers = #tpu.dot_dimension_numbers<[1], [0], [0], [1], [0, 0, 1, 1], [], []>} : vector<16x32xbf16>, vector<32x32xbf16>, vector<16x32xf32> -> vector<16x32xf32>
    %c0_45 = arith.constant 0 : index
    %c0_46 = arith.constant 0 : index
    %114 = vector.load %arg5[%c0_45, %c0_46] : memref<1x32xf32, #tpu.memory_space<vmem>>, vector<1x32xf32>
    %115 = vector.broadcast %114 : vector<1x32xf32> to vector<16x32xf32>
    %116 = arith.addf %113, %115 : vector<16x32xf32>
    %c0_47 = arith.constant 0 : index
    %c0_48 = arith.constant 0 : index
    %c0_49 = arith.constant 0 : index
    %117 = vector.load %arg7[%c0_47, %c0_48, %c0_49] : memref<1x16x32xf32, #tpu.memory_space<vmem>>, vector<1x16x32xf32>
    %118 = vector.shape_cast %117 : vector<1x16x32xf32> to vector<16x32xf32>
    %119 = vector.shape_cast %116 : vector<16x32xf32> to vector<1x16x32xf32>
    tpu.vector_store %arg7[%c0_47, %c0_48, %c0_49], %119 {strides = array<i32>} : memref<1x16x32xf32, #tpu.memory_space<vmem>>, vector<1x16x32xf32>,
    return
  }
  func.func @transform_0(%arg0: i32) -> (i32, i32, i32) {
    %c0_i32 = arith.constant 0 : i32
    %c0_i32_0 = arith.constant 0 : i32
    %c0_i32_1 = arith.constant 0 : i32
    return %arg0, %c0_i32, %c0_i32_0 : i32, i32, i32
  }
  func.func @transform_1(%arg0: i32) -> (i32, i32) {
    %c0_i32 = arith.constant 0 : i32
    %c0_i32_0 = arith.constant 0 : i32
    %c0_i32_1 = arith.constant 0 : i32
    return %c0_i32, %c0_i32_0 : i32, i32
  }
  func.func @transform_2(%arg0: i32) -> (i32, i32) {
    %c0_i32 = arith.constant 0 : i32
    %c0_i32_0 = arith.constant 0 : i32
    %c0_i32_1 = arith.constant 0 : i32
    return %c0_i32, %c0_i32_0 : i32, i32
  }
  func.func @transform_3(%arg0: i32) -> (i32, i32) {
    %c0_i32 = arith.constant 0 : i32
    %c0_i32_0 = arith.constant 0 : i32
    %c0_i32_1 = arith.constant 0 : i32
    return %c0_i32, %c0_i32_0 : i32, i32
  }
  func.func @transform_4(%arg0: i32) -> (i32, i32) {
    %c0_i32 = arith.constant 0 : i32
    %c0_i32_0 = arith.constant 0 : i32
    %c0_i32_1 = arith.constant 0 : i32
    return %c0_i32, %c0_i32_0 : i32, i32
  }
  func.func @transform_5(%arg0: i32) -> (i32, i32, i32) {
    %c0_i32 = arith.constant 0 : i32
    %c0_i32_0 = arith.constant 0 : i32
    %c0_i32_1 = arith.constant 0 : i32
    %c0_i32_2 = arith.constant 0 : i32
    return %c0_i32, %c0_i32_0, %c0_i32_1 : i32, i32, i32
  }
  func.func @transform_6(%arg0: i32) -> (i32, i32, i32) {
    %c0_i32 = arith.constant 0 : i32
    %c0_i32_0 = arith.constant 0 : i32
    %c0_i32_1 = arith.constant 0 : i32
    return %arg0, %c0_i32, %c0_i32_0 : i32, i32, i32
  }
}

module attributes {stable_mosaic.version = 11 : i64} {
  func.func @_attn_block_kernel(%arg0: i32, %arg1: memref<1x16x64xbf16, #tpu.memory_space<vmem>>, %arg2: memref<64x64xbf16, #tpu.memory_space<vmem>>, %arg3: memref<1x64xf32, #tpu.memory_space<vmem>>, %arg4: memref<32x32xbf16, #tpu.memory_space<vmem>>, %arg5: memref<1x32xf32, #tpu.memory_space<vmem>>, %arg6: memref<4x16x16xf32, #tpu.memory_space<vmem>>, %arg7: memref<1x16x32xf32, #tpu.memory_space<vmem>>, %arg8: memref<16x32xf32, #tpu.memory_space<vmem>>) attributes {dimension_semantics = [#tpu.dimension_semantics<parallel>], iteration_bounds = array<i64: 2>, scalar_prefetch = 0 : i64, scratch_operands = 1 : i64, tpu.core_type = #tpu.core_type<tc>, window_params = [{transform_indices = @transform_0, window_bounds = array<i64: 1, 16, 64>}, {pipeline_mode = #tpu.pipeline_mode<synchronous>, transform_indices = @transform_1, window_bounds = array<i64: 64, 64>}, {pipeline_mode = #tpu.pipeline_mode<synchronous>, transform_indices = @transform_2, window_bounds = array<i64: 1, 64>}, {pipeline_mode = #tpu.pipeline_mode<synchronous>, transform_indices = @transform_3, window_bounds = array<i64: 32, 32>}, {pipeline_mode = #tpu.pipeline_mode<synchronous>, transform_indices = @transform_4, window_bounds = array<i64: 1, 32>}, {pipeline_mode = #tpu.pipeline_mode<synchronous>, transform_indices = @transform_5, window_bounds = array<i64: 4, 16, 16>}, {transform_indices = @transform_6, window_bounds = array<i64: 1, 16, 32>}]} {
    %c0 = arith.constant 0 : index
    %c0_0 = arith.constant 0 : index
    %c0_1 = arith.constant 0 : index
    %0 = vector.load %arg1[%c0, %c0_0, %c0_1] : memref<1x16x64xbf16, #tpu.memory_space<vmem>>, vector<1x16x64xbf16>
    %1 = vector.shape_cast %0 : vector<1x16x64xbf16> to vector<16x64xbf16>
    %c0_2 = arith.constant 0 : index
    %c0_3 = arith.constant 0 : index
    %2 = vector.load %arg2[%c0_2, %c0_3] : memref<64x64xbf16, #tpu.memory_space<vmem>>, vector<64x64xbf16>
    %cst = arith.constant dense<0.000000e+00> : vector<16x64xf32>
    %3 = tpu.matmul %1, %2, %cst {dimension_numbers = #tpu.dot_dimension_numbers<[1], [0], [0], [1], [0, 0, 1, 1], [], []>} : vector<16x64xbf16>, vector<64x64xbf16>, vector<16x64xf32> -> vector<16x64xf32>
    %c0_4 = arith.constant 0 : index
    %c0_5 = arith.constant 0 : index
    %4 = vector.load %arg3[%c0_4, %c0_5] : memref<1x64xf32, #tpu.memory_space<vmem>>, vector<1x64xf32>
    %5 = vector.broadcast %4 : vector<1x64xf32> to vector<16x64xf32>
    %6 = arith.addf %3, %5 : vector<16x64xf32>
    %7 = vector.extract_strided_slice %6 {offsets = [0, 0], sizes = [16, 16], strides = [1, 1]} : vector<16x64xf32> to vector<16x16xf32>
    %8 = vector.extract_strided_slice %6 {offsets = [0, 16], sizes = [16, 16], strides = [1, 1]} : vector<16x64xf32> to vector<16x16xf32>
    %9 = vector.extract_strided_slice %6 {offsets = [0, 32], sizes = [16, 32], strides = [1, 1]} : vector<16x64xf32> to vector<16x32xf32>
    %10 = vector.extract_strided_slice %7 {offsets = [0, 0], sizes = [16, 4], strides = [1, 1]} : vector<16x16xf32> to vector<16x4xf32>
    %11 = arith.truncf %10 : vector<16x4xf32> to vector<16x4xbf16>
    %12 = vector.extract_strided_slice %8 {offsets = [0, 0], sizes = [16, 4], strides = [1, 1]} : vector<16x16xf32> to vector<16x4xf32>
    %13 = arith.truncf %12 : vector<16x4xf32> to vector<16x4xbf16>
    %14 = vector.extract_strided_slice %9 {offsets = [0, 0], sizes = [16, 8], strides = [1, 1]} : vector<16x32xf32> to vector<16x8xf32>
    %15 = arith.truncf %14 : vector<16x8xf32> to vector<16x8xbf16>
    %cst_6 = arith.constant dense<0.000000e+00> : vector<16x16xf32>
    %16 = tpu.matmul %11, %13, %cst_6 {dimension_numbers = #tpu.dot_dimension_numbers<[1], [1], [0], [0], [0, 0, 1, 0], [], []>} : vector<16x4xbf16>, vector<16x4xbf16>, vector<16x16xf32> -> vector<16x16xf32>
    %cst_7 = arith.constant 5.000000e-01 : f32
    %17 = vector.broadcast %cst_7 : f32 to vector<16x16xf32>
    %18 = arith.mulf %16, %17 : vector<16x16xf32>
    %c0_8 = arith.constant 0 : index
    %c0_9 = arith.constant 0 : index
    %c0_10 = arith.constant 0 : index
    %19 = vector.load %arg6[%c0_8, %c0_9, %c0_10] : memref<4x16x16xf32, #tpu.memory_space<vmem>>, vector<1x16x16xf32>
    %20 = vector.shape_cast %19 : vector<1x16x16xf32> to vector<16x16xf32>
    %21 = arith.addf %18, %20 : vector<16x16xf32>
    %cst_11 = arith.constant dense<0xFF800000> : vector<16xf32>
    %22 = vector.multi_reduction <maximumf>, %21, %cst_11 [1] : vector<16x16xf32> to vector<16xf32>
    %23 = vector.shape_cast %22 : vector<16xf32> to vector<16x1xf32>
    %24 = vector.broadcast %23 : vector<16x1xf32> to vector<16x16xf32>
    %25 = arith.subf %21, %24 : vector<16x16xf32>
    %26 = math.exp %25 : vector<16x16xf32>
    %cst_12 = arith.constant dense<0.000000e+00> : vector<16xf32>
    %27 = vector.multi_reduction <add>, %26, %cst_12 [1] : vector<16x16xf32> to vector<16xf32>
    %28 = vector.shape_cast %27 : vector<16xf32> to vector<16x1xf32>
    %29 = arith.truncf %26 : vector<16x16xf32> to vector<16x16xbf16>
    %cst_13 = arith.constant dense<0.000000e+00> : vector<16x8xf32>
    %30 = tpu.matmul %29, %15, %cst_13 {dimension_numbers = #tpu.dot_dimension_numbers<[1], [0], [0], [1], [0, 0, 1, 1], [], []>} : vector<16x16xbf16>, vector<16x8xbf16>, vector<16x8xf32> -> vector<16x8xf32>
    %31 = tpu.reciprocal %28 {approx = true} : vector<16x1xf32> -> vector<16x1xf32>
    %32 = vector.broadcast %31 : vector<16x1xf32> to vector<16x8xf32>
    %33 = arith.mulf %30, %32 : vector<16x8xf32>
    %c0_14 = arith.constant 0 : index
    %c0_15 = arith.constant 0 : index
    %34 = vector.load %arg8[%c0_14, %c0_15] : memref<16x32xf32, #tpu.memory_space<vmem>>, vector<16x8xf32>
    tpu.vector_store %arg8[%c0_14, %c0_15], %33 {strides = array<i32>} : memref<16x32xf32, #tpu.memory_space<vmem>>, vector<16x8xf32>,
    %35 = vector.extract_strided_slice %7 {offsets = [0, 4], sizes = [16, 4], strides = [1, 1]} : vector<16x16xf32> to vector<16x4xf32>
    %36 = arith.truncf %35 : vector<16x4xf32> to vector<16x4xbf16>
    %37 = vector.extract_strided_slice %8 {offsets = [0, 4], sizes = [16, 4], strides = [1, 1]} : vector<16x16xf32> to vector<16x4xf32>
    %38 = arith.truncf %37 : vector<16x4xf32> to vector<16x4xbf16>
    %39 = vector.extract_strided_slice %9 {offsets = [0, 8], sizes = [16, 8], strides = [1, 1]} : vector<16x32xf32> to vector<16x8xf32>
    %40 = arith.truncf %39 : vector<16x8xf32> to vector<16x8xbf16>
    %cst_16 = arith.constant dense<0.000000e+00> : vector<16x16xf32>
    %41 = tpu.matmul %36, %38, %cst_16 {dimension_numbers = #tpu.dot_dimension_numbers<[1], [1], [0], [0], [0, 0, 1, 0], [], []>} : vector<16x4xbf16>, vector<16x4xbf16>, vector<16x16xf32> -> vector<16x16xf32>
    %cst_17 = arith.constant 5.000000e-01 : f32
    %42 = vector.broadcast %cst_17 : f32 to vector<16x16xf32>
    %43 = arith.mulf %41, %42 : vector<16x16xf32>
    %c1 = arith.constant 1 : index
    %c0_18 = arith.constant 0 : index
    %c0_19 = arith.constant 0 : index
    %44 = vector.load %arg6[%c1, %c0_18, %c0_19] : memref<4x16x16xf32, #tpu.memory_space<vmem>>, vector<1x16x16xf32>
    %45 = vector.shape_cast %44 : vector<1x16x16xf32> to vector<16x16xf32>
    %46 = arith.addf %43, %45 : vector<16x16xf32>
    %cst_20 = arith.constant dense<0xFF800000> : vector<16xf32>
    %47 = vector.multi_reduction <maximumf>, %46, %cst_20 [1] : vector<16x16xf32> to vector<16xf32>
    %48 = vector.shape_cast %47 : vector<16xf32> to vector<16x1xf32>
    %49 = vector.broadcast %48 : vector<16x1xf32> to vector<16x16xf32>
    %50 = arith.subf %46, %49 : vector<16x16xf32>
    %51 = math.exp %50 : vector<16x16xf32>
    %cst_21 = arith.constant dense<0.000000e+00> : vector<16xf32>
    %52 = vector.multi_reduction <add>, %51, %cst_21 [1] : vector<16x16xf32> to vector<16xf32>
    %53 = vector.shape_cast %52 : vector<16xf32> to vector<16x1xf32>
    %54 = arith.truncf %51 : vector<16x16xf32> to vector<16x16xbf16>
    %cst_22 = arith.constant dense<0.000000e+00> : vector<16x8xf32>
    %55 = tpu.matmul %54, %40, %cst_22 {dimension_numbers = #tpu.dot_dimension_numbers<[1], [0], [0], [1], [0, 0, 1, 1], [], []>} : vector<16x16xbf16>, vector<16x8xbf16>, vector<16x8xf32> -> vector<16x8xf32>
    %56 = tpu.reciprocal %53 {approx = true} : vector<16x1xf32> -> vector<16x1xf32>
    %57 = vector.broadcast %56 : vector<16x1xf32> to vector<16x8xf32>
    %58 = arith.mulf %55, %57 : vector<16x8xf32>
    %c0_23 = arith.constant 0 : index
    %c8 = arith.constant 8 : index
    %59 = vector.load %arg8[%c0_23, %c8] : memref<16x32xf32, #tpu.memory_space<vmem>>, vector<16x8xf32>
    tpu.vector_store %arg8[%c0_23, %c8], %58 {strides = array<i32>} : memref<16x32xf32, #tpu.memory_space<vmem>>, vector<16x8xf32>,
    %60 = vector.extract_strided_slice %7 {offsets = [0, 8], sizes = [16, 4], strides = [1, 1]} : vector<16x16xf32> to vector<16x4xf32>
    %61 = arith.truncf %60 : vector<16x4xf32> to vector<16x4xbf16>
    %62 = vector.extract_strided_slice %8 {offsets = [0, 8], sizes = [16, 4], strides = [1, 1]} : vector<16x16xf32> to vector<16x4xf32>
    %63 = arith.truncf %62 : vector<16x4xf32> to vector<16x4xbf16>
    %64 = vector.extract_strided_slice %9 {offsets = [0, 16], sizes = [16, 8], strides = [1, 1]} : vector<16x32xf32> to vector<16x8xf32>
    %65 = arith.truncf %64 : vector<16x8xf32> to vector<16x8xbf16>
    %cst_24 = arith.constant dense<0.000000e+00> : vector<16x16xf32>
    %66 = tpu.matmul %61, %63, %cst_24 {dimension_numbers = #tpu.dot_dimension_numbers<[1], [1], [0], [0], [0, 0, 1, 0], [], []>} : vector<16x4xbf16>, vector<16x4xbf16>, vector<16x16xf32> -> vector<16x16xf32>
    %cst_25 = arith.constant 5.000000e-01 : f32
    %67 = vector.broadcast %cst_25 : f32 to vector<16x16xf32>
    %68 = arith.mulf %66, %67 : vector<16x16xf32>
    %c2 = arith.constant 2 : index
    %c0_26 = arith.constant 0 : index
    %c0_27 = arith.constant 0 : index
    %69 = vector.load %arg6[%c2, %c0_26, %c0_27] : memref<4x16x16xf32, #tpu.memory_space<vmem>>, vector<1x16x16xf32>
    %70 = vector.shape_cast %69 : vector<1x16x16xf32> to vector<16x16xf32>
    %71 = arith.addf %68, %70 : vector<16x16xf32>
    %cst_28 = arith.constant dense<0xFF800000> : vector<16xf32>
    %72 = vector.multi_reduction <maximumf>, %71, %cst_28 [1] : vector<16x16xf32> to vector<16xf32>
    %73 = vector.shape_cast %72 : vector<16xf32> to vector<16x1xf32>
    %74 = vector.broadcast %73 : vector<16x1xf32> to vector<16x16xf32>
    %75 = arith.subf %71, %74 : vector<16x16xf32>
    %76 = math.exp %75 : vector<16x16xf32>
    %cst_29 = arith.constant dense<0.000000e+00> : vector<16xf32>
    %77 = vector.multi_reduction <add>, %76, %cst_29 [1] : vector<16x16xf32> to vector<16xf32>
    %78 = vector.shape_cast %77 : vector<16xf32> to vector<16x1xf32>
    %79 = arith.truncf %76 : vector<16x16xf32> to vector<16x16xbf16>
    %cst_30 = arith.constant dense<0.000000e+00> : vector<16x8xf32>
    %80 = tpu.matmul %79, %65, %cst_30 {dimension_numbers = #tpu.dot_dimension_numbers<[1], [0], [0], [1], [0, 0, 1, 1], [], []>} : vector<16x16xbf16>, vector<16x8xbf16>, vector<16x8xf32> -> vector<16x8xf32>
    %81 = tpu.reciprocal %78 {approx = true} : vector<16x1xf32> -> vector<16x1xf32>
    %82 = vector.broadcast %81 : vector<16x1xf32> to vector<16x8xf32>
    %83 = arith.mulf %80, %82 : vector<16x8xf32>
    %c0_31 = arith.constant 0 : index
    %c16 = arith.constant 16 : index
    %84 = vector.load %arg8[%c0_31, %c16] : memref<16x32xf32, #tpu.memory_space<vmem>>, vector<16x8xf32>
    tpu.vector_store %arg8[%c0_31, %c16], %83 {strides = array<i32>} : memref<16x32xf32, #tpu.memory_space<vmem>>, vector<16x8xf32>,
    %85 = vector.extract_strided_slice %7 {offsets = [0, 12], sizes = [16, 4], strides = [1, 1]} : vector<16x16xf32> to vector<16x4xf32>
    %86 = arith.truncf %85 : vector<16x4xf32> to vector<16x4xbf16>
    %87 = vector.extract_strided_slice %8 {offsets = [0, 12], sizes = [16, 4], strides = [1, 1]} : vector<16x16xf32> to vector<16x4xf32>
    %88 = arith.truncf %87 : vector<16x4xf32> to vector<16x4xbf16>
    %89 = vector.extract_strided_slice %9 {offsets = [0, 24], sizes = [16, 8], strides = [1, 1]} : vector<16x32xf32> to vector<16x8xf32>
    %90 = arith.truncf %89 : vector<16x8xf32> to vector<16x8xbf16>
    %cst_32 = arith.constant dense<0.000000e+00> : vector<16x16xf32>
    %91 = tpu.matmul %86, %88, %cst_32 {dimension_numbers = #tpu.dot_dimension_numbers<[1], [1], [0], [0], [0, 0, 1, 0], [], []>} : vector<16x4xbf16>, vector<16x4xbf16>, vector<16x16xf32> -> vector<16x16xf32>
    %cst_33 = arith.constant 5.000000e-01 : f32
    %92 = vector.broadcast %cst_33 : f32 to vector<16x16xf32>
    %93 = arith.mulf %91, %92 : vector<16x16xf32>
    %c3 = arith.constant 3 : index
    %c0_34 = arith.constant 0 : index
    %c0_35 = arith.constant 0 : index
    %94 = vector.load %arg6[%c3, %c0_34, %c0_35] : memref<4x16x16xf32, #tpu.memory_space<vmem>>, vector<1x16x16xf32>
    %95 = vector.shape_cast %94 : vector<1x16x16xf32> to vector<16x16xf32>
    %96 = arith.addf %93, %95 : vector<16x16xf32>
    %cst_36 = arith.constant dense<0xFF800000> : vector<16xf32>
    %97 = vector.multi_reduction <maximumf>, %96, %cst_36 [1] : vector<16x16xf32> to vector<16xf32>
    %98 = vector.shape_cast %97 : vector<16xf32> to vector<16x1xf32>
    %99 = vector.broadcast %98 : vector<16x1xf32> to vector<16x16xf32>
    %100 = arith.subf %96, %99 : vector<16x16xf32>
    %101 = math.exp %100 : vector<16x16xf32>
    %cst_37 = arith.constant dense<0.000000e+00> : vector<16xf32>
    %102 = vector.multi_reduction <add>, %101, %cst_37 [1] : vector<16x16xf32> to vector<16xf32>
    %103 = vector.shape_cast %102 : vector<16xf32> to vector<16x1xf32>
    %104 = arith.truncf %101 : vector<16x16xf32> to vector<16x16xbf16>
    %cst_38 = arith.constant dense<0.000000e+00> : vector<16x8xf32>
    %105 = tpu.matmul %104, %90, %cst_38 {dimension_numbers = #tpu.dot_dimension_numbers<[1], [0], [0], [1], [0, 0, 1, 1], [], []>} : vector<16x16xbf16>, vector<16x8xbf16>, vector<16x8xf32> -> vector<16x8xf32>
    %106 = tpu.reciprocal %103 {approx = true} : vector<16x1xf32> -> vector<16x1xf32>
    %107 = vector.broadcast %106 : vector<16x1xf32> to vector<16x8xf32>
    %108 = arith.mulf %105, %107 : vector<16x8xf32>
    %c0_39 = arith.constant 0 : index
    %c24 = arith.constant 24 : index
    %109 = vector.load %arg8[%c0_39, %c24] : memref<16x32xf32, #tpu.memory_space<vmem>>, vector<16x8xf32>
    tpu.vector_store %arg8[%c0_39, %c24], %108 {strides = array<i32>} : memref<16x32xf32, #tpu.memory_space<vmem>>, vector<16x8xf32>,
    %c0_40 = arith.constant 0 : index
    %c0_41 = arith.constant 0 : index
    %110 = vector.load %arg8[%c0_40, %c0_41] : memref<16x32xf32, #tpu.memory_space<vmem>>, vector<16x32xf32>
    %111 = arith.truncf %110 : vector<16x32xf32> to vector<16x32xbf16>
    %c0_42 = arith.constant 0 : index
    %c0_43 = arith.constant 0 : index
    %112 = vector.load %arg4[%c0_42, %c0_43] : memref<32x32xbf16, #tpu.memory_space<vmem>>, vector<32x32xbf16>
    %cst_44 = arith.constant dense<0.000000e+00> : vector<16x32xf32>
    %113 = tpu.matmul %111, %112, %cst_44 {dimension_numbers = #tpu.dot_dimension_numbers<[1], [0], [0], [1], [0, 0, 1, 1], [], []>} : vector<16x32xbf16>, vector<32x32xbf16>, vector<16x32xf32> -> vector<16x32xf32>
    %c0_45 = arith.constant 0 : index
    %c0_46 = arith.constant 0 : index
    %114 = vector.load %arg5[%c0_45, %c0_46] : memref<1x32xf32, #tpu.memory_space<vmem>>, vector<1x32xf32>
    %115 = vector.broadcast %114 : vector<1x32xf32> to vector<16x32xf32>
    %116 = arith.addf %113, %115 : vector<16x32xf32>
    %c0_47 = arith.constant 0 : index
    %c0_48 = arith.constant 0 : index
    %c0_49 = arith.constant 0 : index
    %117 = vector.load %arg7[%c0_47, %c0_48, %c0_49] : memref<1x16x32xf32, #tpu.memory_space<vmem>>, vector<1x16x32xf32>
    %118 = vector.shape_cast %117 : vector<1x16x32xf32> to vector<16x32xf32>
    %119 = vector.shape_cast %116 : vector<16x32xf32> to vector<1x16x32xf32>
    tpu.vector_store %arg7[%c0_47, %c0_48, %c0_49], %119 {strides = array<i32>} : memref<1x16x32xf32, #tpu.memory_space<vmem>>, vector<1x16x32xf32>,
    return
  }
  func.func @transform_0(%arg0: i32) -> (i32, i32, i32) {
    %c0_i32 = arith.constant 0 : i32
    %c0_i32_0 = arith.constant 0 : i32
    %c0_i32_1 = arith.constant 0 : i32
    return %arg0, %c0_i32, %c0_i32_0 : i32, i32, i32
  }
  func.func @transform_1(%arg0: i32) -> (i32, i32) {
    %c0_i32 = arith.constant 0 : i32
    %c0_i32_0 = arith.constant 0 : i32
    %c0_i32_1 = arith.constant 0 : i32
    return %c0_i32, %c0_i32_0 : i32, i32
  }
  func.func @transform_2(%arg0: i32) -> (i32, i32) {
    %c0_i32 = arith.constant 0 : i32
    %c0_i32_0 = arith.constant 0 : i32
    %c0_i32_1 = arith.constant 0 : i32
    return %c0_i32, %c0_i32_0 : i32, i32
  }
  func.func @transform_3(%arg0: i32) -> (i32, i32) {
    %c0_i32 = arith.constant 0 : i32
    %c0_i32_0 = arith.constant 0 : i32
    %c0_i32_1 = arith.constant 0 : i32
    return %c0_i32, %c0_i32_0 : i32, i32
  }
  func.func @transform_4(%arg0: i32) -> (i32, i32) {
    %c0_i32 = arith.constant 0 : i32
    %c0_i32_0 = arith.constant 0 : i32
    %c0_i32_1 = arith.constant 0 : i32
    return %c0_i32, %c0_i32_0 : i32, i32
  }
  func.func @transform_5(%arg0: i32) -> (i32, i32, i32) {
    %c0_i32 = arith.constant 0 : i32
    %c0_i32_0 = arith.constant 0 : i32
    %c0_i32_1 = arith.constant 0 : i32
    %c0_i32_2 = arith.constant 0 : i32
    return %c0_i32, %c0_i32_0, %c0_i32_1 : i32, i32, i32
  }
  func.func @transform_6(%arg0: i32) -> (i32, i32, i32) {
    %c0_i32 = arith.constant 0 : i32
    %c0_i32_0 = arith.constant 0 : i32
    %c0_i32_1 = arith.constant 0 : i32
    return %arg0, %c0_i32, %c0_i32_0 : i32, i32, i32
  }
}

module attributes {stable_mosaic.version = 11 : i64} {
  func.func @_linear_kernel(%arg0: i32, %arg1: memref<32x32xbf16, #tpu.memory_space<vmem>>, %arg2: memref<32x240xbf16, #tpu.memory_space<vmem>>, %arg3: memref<1x240xf32, #tpu.memory_space<vmem>>, %arg4: memref<32x240xf32, #tpu.memory_space<vmem>>) attributes {dimension_semantics = [#tpu.dimension_semantics<parallel>], iteration_bounds = array<i64: 1>, scalar_prefetch = 0 : i64, scratch_operands = 0 : i64, tpu.core_type = #tpu.core_type<tc>, window_params = [{transform_indices = @transform_0, window_bounds = array<i64: 32, 32>}, {pipeline_mode = #tpu.pipeline_mode<synchronous>, transform_indices = @transform_1, window_bounds = array<i64: 32, 240>}, {pipeline_mode = #tpu.pipeline_mode<synchronous>, transform_indices = @transform_2, window_bounds = array<i64: 1, 240>}, {transform_indices = @transform_3, window_bounds = array<i64: 32, 240>}]} {
    %c0 = arith.constant 0 : index
    %c0_0 = arith.constant 0 : index
    %0 = vector.load %arg1[%c0, %c0_0] : memref<32x32xbf16, #tpu.memory_space<vmem>>, vector<32x32xbf16>
    %c0_1 = arith.constant 0 : index
    %c0_2 = arith.constant 0 : index
    %1 = vector.load %arg2[%c0_1, %c0_2] : memref<32x240xbf16, #tpu.memory_space<vmem>>, vector<32x240xbf16>
    %cst = arith.constant dense<0.000000e+00> : vector<32x240xf32>
    %2 = tpu.matmul %0, %1, %cst {dimension_numbers = #tpu.dot_dimension_numbers<[1], [0], [0], [1], [0, 0, 1, 1], [], []>} : vector<32x32xbf16>, vector<32x240xbf16>, vector<32x240xf32> -> vector<32x240xf32>
    %c0_3 = arith.constant 0 : index
    %c0_4 = arith.constant 0 : index
    %3 = vector.load %arg3[%c0_3, %c0_4] : memref<1x240xf32, #tpu.memory_space<vmem>>, vector<1x240xf32>
    %4 = vector.broadcast %3 : vector<1x240xf32> to vector<32x240xf32>
    %5 = arith.addf %2, %4 : vector<32x240xf32>
    %c0_5 = arith.constant 0 : index
    %c0_6 = arith.constant 0 : index
    %6 = vector.load %arg4[%c0_5, %c0_6] : memref<32x240xf32, #tpu.memory_space<vmem>>, vector<32x240xf32>
    tpu.vector_store %arg4[%c0_5, %c0_6], %5 {strides = array<i32>} : memref<32x240xf32, #tpu.memory_space<vmem>>, vector<32x240xf32>,
    return
  }
  func.func @transform_0(%arg0: i32) -> (i32, i32) {
    %c0_i32 = arith.constant 0 : i32
    %c0_i32_0 = arith.constant 0 : i32
    return %arg0, %c0_i32 : i32, i32
  }
  func.func @transform_1(%arg0: i32) -> (i32, i32) {
    %c0_i32 = arith.constant 0 : i32
    %c0_i32_0 = arith.constant 0 : i32
    %c0_i32_1 = arith.constant 0 : i32
    return %c0_i32, %c0_i32_0 : i32, i32
  }
  func.func @transform_2(%arg0: i32) -> (i32, i32) {
    %c0_i32 = arith.constant 0 : i32
    %c0_i32_0 = arith.constant 0 : i32
    %c0_i32_1 = arith.constant 0 : i32
    return %c0_i32, %c0_i32_0 : i32, i32
  }
  func.func @transform_3(%arg0: i32) -> (i32, i32) {
    %c0_i32 = arith.constant 0 : i32
    %c0_i32_0 = arith.constant 0 : i32
    return %arg0, %c0_i32 : i32, i32
  }
}

</mosaic_0001>

<llo_original>
// kernel: parallel_model_forward.7
$region0: #{parallel_model_forward.7}
  #allocation0 [shape = 'u32[]', space=smem, size = 0x4, offset = 0x4, fixed_abs, tag = 'smem constant byte address 0x4 - core index']
  #allocation1 [shape = 'u32[144,128]{1,0:T(1,128)}', space=vmem, size = 0x12000, scoped, tag = 'internal scratch']
  %s0 = inlined_call_operand.vmem [shape: bf16[32,32], index: 0, kind: input, shape index: {}]
  %s1 = inlined_call_operand.vmem [shape: bf16[32,240], index: 1, kind: input, shape index: {}]
  %s2 = inlined_call_operand.vmem [shape: f32[1,240], index: 2, kind: input, shape index: {}]
  %s3 = inlined_call_operand.hbm [shape: f32[32,240], index: 3, kind: output, shape index: {}]
  %s4 = sld [smem:[#allocation0]]
  $region22: #{parallel_model_forward.7} parent=0
    _
  %s6 = ssub.s32 1, %s4
  %s7 = scalar_select 0, %s6, %s4
  $region1: #{parallel_model_forward.7} parent=0
    #allocation2 [shape = 'u8[32768]{0}', space=vmem, size = 0x8000, scoped, tag = 'output window, operand 0, single buffered']
    #allocation3 [shape = 's32[1]{0}', space=sflag, size = 0x4, scoped, tag = 'scoped memory for parallel_model_forward.7']
    %8 = vsyncpa [#allocation3], 0
    // Predicated region
    $region2: #{parallel_model_forward.7} parent=1 // pred_check
      _
    $region3: #{parallel_model_forward.7} parent=1 // pred_check_branch
      %10 = sbr.rel (0) target = $region5
    $region4: #{parallel_model_forward.7} parent=1 // pred_region
      _
    $region5: #{parallel_model_forward.7} parent=1 // pred_fallthru
      _
    // Predicated region
    $region6: #{parallel_model_forward.7} parent=1 // pred_check
      _
    $region7: #{parallel_model_forward.7} parent=1 // pred_check_branch
      %12 = sbr.rel (0) target = $region9
    $region8: #{parallel_model_forward.7} parent=1 // pred_region
      _
    $region9: #{parallel_model_forward.7} parent=1 // pred_fallthru
      _
    // Predicated region
    $region10: #{parallel_model_forward.7} parent=1 // pred_check
      _
    $region11: #{parallel_model_forward.7} parent=1 // pred_check_branch
      %14 = sbr.rel (0) target = $region13
    $region12: #{parallel_model_forward.7} parent=1 // pred_region
      _
    $region13: #{parallel_model_forward.7} parent=1 // pred_fallthru
      _
    %v16 = vld [vmem:[%s0] sm:$0xf]
    %v17 = vld [vmem:[%s0 + $0x4] sm:$0xf]
    %v18 = vld [vmem:[%s0 + $0x8] sm:$0xf]
    %v19 = vld [vmem:[%s0 + $0xc] sm:$0xf]
    %v20 = vld [vmem:[%s1] sm:$0xff]
    %v21 = vld [vmem:[%s1 + $0x8] sm:$0xff]
    %v22 = vld [vmem:[%s1 + $0x10] sm:$0xff]
    %v23 = vld [vmem:[%s1 + $0x18] sm:$0xff]
    %v24 = vld [vmem:[%s2] sm:$0x3]
    %v26 = vlaneseq
    %v27 = vshrl.u32 %v26, 7
    %v28 = vsub.s32 0, %v27
    %v29 = vrot.slane %v24, %v28
    %v30 = vlaneseq
    %v31 = vshrl.u32 %v30, 7
    %v32 = vsub.s32 1, %v31
    %v33 = vrot.slane %v24, %v32
    %v40 = vunpack.c.l.b16 %v16
    %v41 = vunpack.c.l.b16 %v17
    %v42 = vunpack.c.l.b16 %v18
    %v43 = vunpack.c.l.b16 %v19
    %v44 = vpack.c.b16 %v41, %v40
    %v45 = vpack.c.b16 %v43, %v42
    %v50 = vunpack.c.l.b16 %v20
    %v51 = vunpack.c.h.b16 %v20
    %v52 = vunpack.c.l.b16 %v21
    %v53 = vunpack.c.h.b16 %v21
    %v54 = vunpack.c.l.b16 %v22
    %v55 = vunpack.c.h.b16 %v22
    %v56 = vunpack.c.l.b16 %v23
    %v57 = vunpack.c.h.b16 %v23
    %v58 = vpack.c.b16 %v52, %v50
    %v59 = vpack.c.b16 %v53, %v51
    %v60 = vpack.c.b16 %v56, %v54
    %v61 = vpack.c.b16 %v57, %v55
    %vm66 = vcmask 261120
    %v68 = vsel %vm66, %v44, 0
    %v71 = vsel %vm66, %v45, 0
    %73 = vmatprep.subr.bf16.mxu0 %v59
    %74 = vmatpush1.bf16.msra.mxu0 %v58
    %75 = vmatprep.subr.bf16.mxu0 %v61
    %76 = vmatpush1.bf16.msra.mxu0 %v60
    %77 = vmatprep.subr.bf16.mxu0 0
    %78 = vmatpush1.bf16.msra.mxu0 0
    %79 = vmatprep.subr.bf16.mxu0 0
    %80 = vmatpush1.bf16.msra.mxu0 0
    %81 = vmatprep.subr.bf16.mxu0 0
    %82 = vmatpush1.bf16.msra.mxu0 0
    %83 = vmatprep.subr.bf16.mxu0 0
    %84 = vmatpush1.bf16.msra.mxu0 0
    %85 = vmatprep.subr.bf16.mxu0 0
    %86 = vmatpush1.bf16.msra.mxu0 0
    %87 = vmatprep.subr.bf16.mxu0 0
    %88 = vmatpush1.bf16.msra.mxu0 0
    %89 = vmatprep.subr.bf16.mxu0 0
    %90 = vmatpush1.bf16.msra.mxu0 0
    %91 = vmatprep.subr.bf16.mxu0 0
    %92 = vmatpush1.bf16.msra.mxu0 0
    %93 = vmatprep.subr.bf16.mxu0 0
    %94 = vmatpush1.bf16.msra.mxu0 0
    %95 = vmatprep.subr.bf16.mxu0 0
    %96 = vmatpush1.bf16.msra.mxu0 0
    %97 = vmatprep.subr.bf16.mxu0 0
    %98 = vmatpush1.bf16.msra.mxu0 0
    %99 = vmatprep.subr.bf16.mxu0 0
    %100 = vmatpush1.bf16.msra.mxu0 0
    %101 = vmatprep.subr.bf16.mxu0 0
    %102 = vmatpush1.bf16.msra.mxu0 0
    %103 = vmatprep.subr.bf16.mxu0 0
    %104 = vmatpush1.bf16.msra.mxu0 0
    %105 = vmatprep.mubr.bf16.mxu0 0
    %106 = vmatmul.mubr.bf16.gmra.mrb[0].mxu0 %v68
    %v107 = vpop.f32.mrb[0].mxu0
    %v108 = vadd.f32 %v29, %v107
    %v109 = vpop.f32.mrb[0].mxu0
    %v110 = vadd.f32 %v33, %v109
    %v111 = vpop.f32.mrb[0].mxu0
    %v112 = vadd.f32 %v29, %v111
    %v113 = vpop.f32.mrb[0].mxu0
    %v114 = vadd.f32 %v33, %v113
    %115 = vmatprep.mubr.bf16.mxu0 0
    %116 = vmatmul.mubr.bf16.gmra.mrb[0].mxu0 %v71
    %v117 = vpop.f32.mrb[0].mxu0
    %v118 = vadd.f32 %v29, %v117
    %v119 = vpop.f32.mrb[0].mxu0
    %v120 = vadd.f32 %v33, %v119
    %v121 = vpop.f32.mrb[0].mxu0
    %v122 = vadd.f32 %v29, %v121
    %v123 = vpop.f32.mrb[0].mxu0
    %v124 = vadd.f32 %v33, %v123
    %125 = vdwg.mxu0
    %126 = vst [vmem:[#allocation2] sm:$0xff] %v108
    %vm127 = vcmask 916480
    %128 = vst.msk [vmem:[#allocation2 + $0x8] sm:$0xff] %vm127, %v110
    %129 = vst [vmem:[#allocation2 + $0x10] sm:$0xff] %v112
    %130 = vst.msk [vmem:[#allocation2 + $0x18] sm:$0xff] %vm127, %v114
    %131 = vst [vmem:[#allocation2 + $0x20] sm:$0xff] %v118
    %132 = vst.msk [vmem:[#allocation2 + $0x28] sm:$0xff] %vm127, %v120
    %133 = vst [vmem:[#allocation2 + $0x30] sm:$0xff] %v122
    %134 = vst.msk [vmem:[#allocation2 + $0x38] sm:$0xff] %vm127, %v124
    // Predicated region
    $region14: #{parallel_model_forward.7} parent=1 // pred_check
      _
    $region15: #{parallel_model_forward.7} parent=1 // pred_check_branch
      %136 = sbr.rel (0) target = $region17
    $region16: #{parallel_model_forward.7} parent=1 // pred_region
      %s138 = ssub.s32 1024, 1024
      %139 = vsyncadd [#allocation3], %s138
      %s140 = sshll.u32 [#allocation2], 4
      %s141 = int_to_ptr.vmem [resolvable:$true] %s140
      %146 = dma.vmem_to_hbm [thread:$0]  %s141, 1024, %s3, [#allocation3], 256, 256, 16
    $region17: #{parallel_model_forward.7} parent=1 // pred_fallthru
      _
    // Predicated region
    $region18: #{parallel_model_forward.7} parent=1 // pred_check
      _
    $region19: #{parallel_model_forward.7} parent=1 // pred_check_branch
      %148 = sbr.rel (0) target = $region21
    $region20: #{parallel_model_forward.7} parent=1 // pred_region
      %149 = dma.done [#allocation3], 1024
    $region21: #{parallel_model_forward.7} parent=1 // pred_fallthru
      _
    %150 = vsyncpa [#allocation3], 1

// kernel: parallel_model_forward.6
$region0: #{parallel_model_forward.6}
  #allocation0 [shape = 'u32[]', space=smem, size = 0x4, offset = 0x4, fixed_abs, tag = 'smem constant byte address 0x4 - core index']
  #allocation1 [shape = 'u32[144,128]{1,0:T(1,128)}', space=vmem, size = 0x12000, scoped, tag = 'internal scratch']
  #allocation2 [shape = 'f32[16,32]{1,0:T(8,128)}', space=vmem, size = 0x2000, scoped, tag = 'scratch operand']
  %s0 = inlined_call_operand.vmem [shape: bf16[2,16,64], index: 0, kind: input, shape index: {}]
  %s1 = inlined_call_operand.vmem [shape: bf16[64,64], index: 1, kind: input, shape index: {}]
  %s2 = inlined_call_operand.vmem [shape: f32[1,64], index: 2, kind: input, shape index: {}]
  %s3 = inlined_call_operand.vmem [shape: bf16[32,32], index: 3, kind: input, shape index: {}]
  %s4 = inlined_call_operand.vmem [shape: f32[1,32], index: 4, kind: input, shape index: {}]
  %s5 = inlined_call_operand.vmem [shape: f32[4,16,16], index: 5, kind: input, shape index: {}]
  %s6 = inlined_call_operand.vmem [shape: f32[2,16,32], index: 6, kind: output, shape index: {}]
  %s7 = sld [smem:[#allocation0]]
  $region57: #{parallel_model_forward.6} parent=0
    _
  %s9 = ssub.s32 1, %s7
  %s10 = scalar_select 0, %s9, %s7
  loop: start=0, step=1, limit=4
  $region2: #{parallel_model_forward.6} parent=0 // loop_pre_header
    _
  $region3: #{parallel_model_forward.6} parent=0 // loop_header
    %s12 = sphi 0, %s16
    %p13 = scmp.ge.s32.totalorder %s12, 4
    %s22 = sphi 0, %s24
    %s25 = sphi 0, %s22
    %s26 = sphi 0, %s25
    %s42 = sphi 0, %s26
    %s46 = sphi 0, %s46
    %s48 = sphi 0, %s46
    %s49 = sphi 0, %s48
    %s63 = sphi 0, %s49
    %s67 = sphi 0, %s67
    %s69 = sphi 0, %s67
    %s70 = sphi 0, %s69
    %s84 = sphi 0, %s70
    %s88 = sphi 0, %s88
    %s90 = sphi 0, %s88
    %s91 = sphi 0, %s90
    %s105 = sphi 0, %s91
    %s109 = sphi 0, %s109
    %s111 = sphi 0, %s109
    %s112 = sphi 0, %s111
    %s126 = sphi 0, %s112
    %s130 = sphi 0, %s130
    %s132 = sphi 0, %s130
    %s133 = sphi 0, %s132
    %s147 = sphi 0, %s133
    %s153 = sphi 0, %s155
    %s156 = sphi 0, %s153
    %s157 = sphi 0, %s156
    %s173 = sphi 0, %s157
  $region4: #{parallel_model_forward.6} parent=0 // loop_header_branch
    %15 = sbr.rel (%p13) target = $region8
  $region5: #{parallel_model_forward.6} parent=0 // loop_body
    %s17 = ssub.s32 %s12, 1
    %s18 = ssub.s32 %s12, 2
    %s19 = sadd.s32 %s12, 1
    %s20 = ssub.s32 %s12, %s19
    %p21 = scmp.eq.s32.totalorder %s20, 0
    %s23 = sadd.s32 %s22, 1
    %s24 = scalar_select %p21, %s22, %s23
    %p27 = pneg %p21
    %p28 = scmp.eq.s32.totalorder %s12, 1
    %p29 = por %p27, %p28
    %p30 = scmp.ne.s32.totalorder %s22, %s25
    %p31 = scmp.eq.s32.totalorder %s12, 0
    %p32 = por %p30, %p31
    %p33 = scmp.ne.s32.totalorder %s22, %s25
    %p34 = scmp.eq.s32.totalorder %s17, 1
    %p35 = por %p33, %p34
    %p36 = scmp.ne.s32.totalorder %s25, %s26
    %p37 = scmp.eq.s32.totalorder %s17, 0
    %p38 = por %p36, %p37
    %p39 = scmp.ne.s32.totalorder %s25, %s26
    %p40 = scmp.eq.s32.totalorder %s18, 1
    %p41 = por %p39, %p40
    %p43 = scmp.ne.s32.totalorder %s26, %s42
    %p44 = scmp.eq.s32.totalorder %s18, 0
    %p45 = por %p43, %p44
    %s47 = sadd.s32 %s46, 1
    %p50 = scmp.eq.s32.totalorder %s12, 1
    %p51 = scmp.ne.s32.totalorder %s46, %s48
    %p52 = scmp.eq.s32.totalorder %s12, 0
    %p53 = por %p51, %p52
    %p54 = scmp.ne.s32.totalorder %s46, %s48
    %p55 = scmp.eq.s32.totalorder %s17, 1
    %p56 = por %p54, %p55
    %p57 = scmp.ne.s32.totalorder %s48, %s49
    %p58 = scmp.eq.s32.totalorder %s17, 0
    %p59 = por %p57, %p58
    %p60 = scmp.ne.s32.totalorder %s48, %s49
    %p61 = scmp.eq.s32.totalorder %s18, 1
    %p62 = por %p60, %p61
    %p64 = scmp.ne.s32.totalorder %s49, %s63
    %p65 = scmp.eq.s32.totalorder %s18, 0
    %p66 = por %p64, %p65
    %s68 = sadd.s32 %s67, 1
    %p71 = scmp.eq.s32.totalorder %s12, 1
    %p72 = scmp.ne.s32.totalorder %s67, %s69
    %p73 = scmp.eq.s32.totalorder %s12, 0
    %p74 = por %p72, %p73
    %p75 = scmp.ne.s32.totalorder %s67, %s69
    %p76 = scmp.eq.s32.totalorder %s17, 1
    %p77 = por %p75, %p76
    %p78 = scmp.ne.s32.totalorder %s69, %s70
    %p79 = scmp.eq.s32.totalorder %s17, 0
    %p80 = por %p78, %p79
    %p81 = scmp.ne.s32.totalorder %s69, %s70
    %p82 = scmp.eq.s32.totalorder %s18, 1
    %p83 = por %p81, %p82
    %p85 = scmp.ne.s32.totalorder %s70, %s84
    %p86 = scmp.eq.s32.totalorder %s18, 0
    %p87 = por %p85, %p86
    %s89 = sadd.s32 %s88, 1
    %p92 = scmp.eq.s32.totalorder %s12, 1
    %p93 = scmp.ne.s32.totalorder %s88, %s90
    %p94 = scmp.eq.s32.totalorder %s12, 0
    %p95 = por %p93, %p94
    %p96 = scmp.ne.s32.totalorder %s88, %s90
    %p97 = scmp.eq.s32.totalorder %s17, 1
    %p98 = por %p96, %p97
    %p99 = scmp.ne.s32.totalorder %s90, %s91
    %p100 = scmp.eq.s32.totalorder %s17, 0
    %p101 = por %p99, %p100
    %p102 = scmp.ne.s32.totalorder %s90, %s91
    %p103 = scmp.eq.s32.totalorder %s18, 1
    %p104 = por %p102, %p103
    %p106 = scmp.ne.s32.totalorder %s91, %s105
    %p107 = scmp.eq.s32.totalorder %s18, 0
    %p108 = por %p106, %p107
    %s110 = sadd.s32 %s109, 1
    %p113 = scmp.eq.s32.totalorder %s12, 1
    %p114 = scmp.ne.s32.totalorder %s109, %s111
    %p115 = scmp.eq.s32.totalorder %s12, 0
    %p116 = por %p114, %p115
    %p117 = scmp.ne.s32.totalorder %s109, %s111
    %p118 = scmp.eq.s32.totalorder %s17, 1
    %p119 = por %p117, %p118
    %p120 = scmp.ne.s32.totalorder %s111, %s112
    %p121 = scmp.eq.s32.totalorder %s17, 0
    %p122 = por %p120, %p121
    %p123 = scmp.ne.s32.totalorder %s111, %s112
    %p124 = scmp.eq.s32.totalorder %s18, 1
    %p125 = por %p123, %p124
    %p127 = scmp.ne.s32.totalorder %s112, %s126
    %p128 = scmp.eq.s32.totalorder %s18, 0
    %p129 = por %p127, %p128
    %s131 = sadd.s32 %s130, 1
    %p134 = scmp.eq.s32.totalorder %s12, 1
    %p135 = scmp.ne.s32.totalorder %s130, %s132
    %p136 = scmp.eq.s32.totalorder %s12, 0
    %p137 = por %p135, %p136
    %p138 = scmp.ne.s32.totalorder %s130, %s132
    %p139 = scmp.eq.s32.totalorder %s17, 1
    %p140 = por %p138, %p139
    %p141 = scmp.ne.s32.totalorder %s132, %s133
    %p142 = scmp.eq.s32.totalorder %s17, 0
    %p143 = por %p141, %p142
    %p144 = scmp.ne.s32.totalorder %s132, %s133
    %p145 = scmp.eq.s32.totalorder %s18, 1
    %p146 = por %p144, %p145
    %p148 = scmp.ne.s32.totalorder %s133, %s147
    %p149 = scmp.eq.s32.totalorder %s18, 0
    %p150 = por %p148, %p149
    %s151 = ssub.s32 %s12, %s19
    %p152 = scmp.eq.s32.totalorder %s151, 0
    %s154 = sadd.s32 %s153, 1
    %s155 = scalar_select %p152, %s153, %s154
    %p158 = pneg %p152
    %p159 = scmp.eq.s32.totalorder %s12, 1
    %p160 = por %p158, %p159
    %p161 = scmp.ne.s32.totalorder %s153, %s156
    %p162 = scmp.eq.s32.totalorder %s12, 0
    %p163 = por %p161, %p162
    %p164 = scmp.ne.s32.totalorder %s153, %s156
    %p165 = scmp.eq.s32.totalorder %s17, 1
    %p166 = por %p164, %p165
    %p167 = scmp.ne.s32.totalorder %s156, %s157
    %p168 = scmp.eq.s32.totalorder %s17, 0
    %p169 = por %p167, %p168
    %p170 = scmp.ne.s32.totalorder %s156, %s157
    %p171 = scmp.eq.s32.totalorder %s18, 1
    %p172 = por %p170, %p171
    %p174 = scmp.ne.s32.totalorder %s157, %s173
    %p175 = scmp.eq.s32.totalorder %s18, 0
    %p176 = por %p174, %p175
    %p177 = scmp.le.s32.totalorder 1, %s12
    %p178 = scmp.lt.s32.totalorder %s12, 3
    %p179 = pnand %p177, %p178
    %p180 = pneg %p179
    // Predicated region
    $region9: #{parallel_model_forward.6} parent=5 // pred_check
      _
    $region10: #{parallel_model_forward.6} parent=5 // pred_check_branch
      %182 = sbr.rel (%p179) target = $region12
    $region11: #{parallel_model_forward.6} parent=5 // pred_region
      %s183 = ssub.s32 %s12, 1
      // Predicated region
      $region13: #{parallel_model_forward.6} parent=11 // pred_check
        %p184 = pneg %p59
      $region14: #{parallel_model_forward.6} parent=11 // pred_check_branch
        %186 = sbr.rel (%p184) target = $region16
      $region15: #{parallel_model_forward.6} parent=11 // pred_region
        _
      $region16: #{parallel_model_forward.6} parent=11 // pred_fallthru
        _
      // Predicated region
      $region17: #{parallel_model_forward.6} parent=11 // pred_check
        %p187 = pneg %p80
      $region18: #{parallel_model_forward.6} parent=11 // pred_check_branch
        %189 = sbr.rel (%p187) target = $region20
      $region19: #{parallel_model_forward.6} parent=11 // pred_region
        _
      $region20: #{parallel_model_forward.6} parent=11 // pred_fallthru
        _
      // Predicated region
      $region21: #{parallel_model_forward.6} parent=11 // pred_check
        %p190 = pneg %p101
      $region22: #{parallel_model_forward.6} parent=11 // pred_check_branch
        %192 = sbr.rel (%p190) target = $region24
      $region23: #{parallel_model_forward.6} parent=11 // pred_region
        _
      $region24: #{parallel_model_forward.6} parent=11 // pred_fallthru
        _
      // Predicated region
      $region25: #{parallel_model_forward.6} parent=11 // pred_check
        %p193 = pneg %p122
      $region26: #{parallel_model_forward.6} parent=11 // pred_check_branch
        %195 = sbr.rel (%p193) target = $region28
      $region27: #{parallel_model_forward.6} parent=11 // pred_region
        _
      $region28: #{parallel_model_forward.6} parent=11 // pred_fallthru
        _
      // Predicated region
      $region29: #{parallel_model_forward.6} parent=11 // pred_check
        %p196 = pneg %p143
      $region30: #{parallel_model_forward.6} parent=11 // pred_check_branch
        %198 = sbr.rel (%p196) target = $region32
      $region31: #{parallel_model_forward.6} parent=11 // pred_region
        _
      $region32: #{parallel_model_forward.6} parent=11 // pred_fallthru
        _
    $region12: #{parallel_model_forward.6} parent=5 // pred_fallthru
      _
    %p199 = scmp.lt.s32.totalorder %s12, 2
    // Predicated region
    $region33: #{parallel_model_forward.6} parent=5 // pred_check
      %p200 = pneg %p199
    $region34: #{parallel_model_forward.6} parent=5 // pred_check_branch
      %202 = sbr.rel (%p200) target = $region36
    $region35: #{parallel_model_forward.6} parent=5 // pred_region
      // Predicated region
      $region37: #{parallel_model_forward.6} parent=35 // pred_check
        %p203 = pneg %p32
      $region38: #{parallel_model_forward.6} parent=35 // pred_check_branch
        %205 = sbr.rel (%p203) target = $region40
      $region39: #{parallel_model_forward.6} parent=35 // pred_region
        %p206 = scmp.lt.s32.totalorder %s12, 1
        %s207 = scalar_select %p206, %s12, 1
        %s208 = smul.addr %s207, 2
        %s209 = smul.addr %s208, 4
        %s210 = scalar_lea.vmem %s0, %s209
      $region40: #{parallel_model_forward.6} parent=35 // pred_fallthru
        _
    $region36: #{parallel_model_forward.6} parent=5 // pred_fallthru
      _
    %p211 = scmp.le.s32.totalorder 1, %s12
    %p212 = scmp.lt.s32.totalorder %s12, 3
    %p213 = pnand %p211, %p212
    %p214 = pneg %p213
    // Predicated region
    $region41: #{parallel_model_forward.6} parent=5 // pred_check
      _
    $region42: #{parallel_model_forward.6} parent=5 // pred_check_branch
      %216 = sbr.rel (%p213) target = $region44
    $region43: #{parallel_model_forward.6} parent=5 // pred_region
      %s217 = ssub.s32 %s12, 1
      %p218 = scmp.lt.s32.totalorder %s17, 1
      %s219 = scalar_select %p218, %s17, 1
      %s220 = smul.addr %s219, 2
      %s221 = smul.addr %s220, 4
      %s222 = scalar_lea.vmem %s0, %s221
      %p223 = pneg %p38
      %p224 = pneg %p35
      %p225 = pneg %p59
      %p226 = pneg %p56
      %p227 = pneg %p80
      %p228 = pneg %p77
      %p229 = pneg %p101
      %p230 = pneg %p98
      %p231 = pneg %p122
      %p232 = pneg %p119
      %p233 = pneg %p143
      %p234 = pneg %p140
      %p235 = pneg %p169
      %p236 = pneg %p166
      %p237 = scmp.lt.s32.totalorder %s17, 1
      %s238 = scalar_select %p237, %s17, 1
      %s239 = smul.addr %s238, 2
      %s240 = smul.addr %s239, 8
      %s241 = scalar_lea.vmem %s6, %s240
      %p242 = scmp.lt.s32.totalorder %s17, 1
      %s243 = scalar_select %p242, %s17, 1
      %s244 = smul.addr %s243, 2
      %s245 = smul.addr %s244, 4
      %s246 = scalar_lea.vmem %s0, %s245
      %p247 = scmp.lt.s32.totalorder %s17, 1
      %s248 = scalar_select %p247, %s17, 1
      %s249 = smul.addr %s248, 2
      %s250 = smul.addr %s249, 8
      %s251 = scalar_lea.vmem %s6, %s250
      %v253 = vld [vmem:[%s246] sm:$0xf]
      %v254 = vld [vmem:[%s246 + $0x4] sm:$0xf]
      %v255 = vld [vmem:[%s1] sm:$0xf]
      %v256 = vld [vmem:[%s1 + $0x4] sm:$0xf]
      %v257 = vld [vmem:[%s1 + $0x8] sm:$0xf]
      %v258 = vld [vmem:[%s1 + $0xc] sm:$0xf]
      %v259 = vld [vmem:[%s1 + $0x10] sm:$0xf]
      %v260 = vld [vmem:[%s1 + $0x14] sm:$0xf]
      %v261 = vld [vmem:[%s1 + $0x18] sm:$0xf]
      %v262 = vld [vmem:[%s1 + $0x1c] sm:$0xf]
      %v263 = vld [vmem:[%s2] sm:$0x1]
      %v265 = vlaneseq
      %v266 = vshrl.u32 %v265, 7
      %v267 = vsub.s32 0, %v266
      %v268 = vrot.slane %v263, %v267
      %v272 = vunpack.c.l.b16 %v253
      %v273 = vunpack.c.l.b16 %v254
      %v274 = vpack.c.b16 %v273, %v272
      %v283 = vunpack.c.l.b16 %v255
      %v284 = vunpack.c.l.b16 %v256
      %v285 = vunpack.c.l.b16 %v257
      %v286 = vunpack.c.l.b16 %v258
      %v287 = vunpack.c.l.b16 %v259
      %v288 = vunpack.c.l.b16 %v260
      %v289 = vunpack.c.l.b16 %v261
      %v290 = vunpack.c.l.b16 %v262
      %v291 = vpack.c.b16 %v284, %v283
      %v292 = vpack.c.b16 %v286, %v285
      %v293 = vpack.c.b16 %v288, %v287
      %v294 = vpack.c.b16 %v290, %v289
      %vm299 = vcmask 523264
      %v301 = vsel %vm299, %v274, 0
      %303 = vmatprep.subr.bf16.mxu0 0
      %304 = vmatpush1.bf16.msra.mxu0 %v291
      %305 = vmatprep.subr.bf16.mxu0 0
      %306 = vmatpush1.bf16.msra.mxu0 %v292
      %307 = vmatprep.subr.bf16.mxu0 0
      %308 = vmatpush1.bf16.msra.mxu0 %v293
      %309 = vmatprep.subr.bf16.mxu0 0
      %310 = vmatpush1.bf16.msra.mxu0 %v294
      %311 = vmatprep.subr.bf16.mxu0 0
      %312 = vmatpush1.bf16.msra.mxu0 0
      %313 = vmatprep.subr.bf16.mxu0 0
      %314 = vmatpush1.bf16.msra.mxu0 0
      %315 = vmatprep.subr.bf16.mxu0 0
      %316 = vmatpush1.bf16.msra.mxu0 0
      %317 = vmatprep.subr.bf16.mxu0 0
      %318 = vmatpush1.bf16.msra.mxu0 0
      %319 = vmatprep.subr.bf16.mxu0 0
      %320 = vmatpush1.bf16.msra.mxu0 0
      %321 = vmatprep.subr.bf16.mxu0 0
      %322 = vmatpush1.bf16.msra.mxu0 0
      %323 = vmatprep.subr.bf16.mxu0 0
      %324 = vmatpush1.bf16.msra.mxu0 0
      %325 = vmatprep.subr.bf16.mxu0 0
      %326 = vmatpush1.bf16.msra.mxu0 0
      %327 = vmatprep.subr.bf16.mxu0 0
      %328 = vmatpush1.bf16.msra.mxu0 0
      %329 = vmatprep.subr.bf16.mxu0 0
      %330 = vmatpush1.bf16.msra.mxu0 0
      %331 = vmatprep.subr.bf16.mxu0 0
      %332 = vmatpush1.bf16.msra.mxu0 0
      %333 = vmatprep.subr.bf16.mxu0 0
      %334 = vmatpush1.bf16.msra.mxu0 0
      %335 = vmatprep.mubr.bf16.mxu0 0
      %336 = vmatmul.mubr.bf16.gmra.mrb[0].mxu0 %v301
      %v337 = vpop.f32.mrb[0].mxu0
      %v338 = vadd.f32 %v268, %v337
      %v339 = vpop.f32.mrb[0].mxu0
      %v340 = vpop.f32.mrb[0].mxu0
      %v341 = vadd.f32 %v268, %v340
      %v342 = vpop.f32.mrb[0].mxu0
      %343 = vdwg.mxu0
      %v344 = vpack.c.bf16 %v341, %v338
      %346 = vrot.lane.b32.xlu0 %v344, 112
      %v347 = vpop.permute.xlu0 %346
      %vm348 = vcmask 31744
      %v350 = vsel %vm348, %v344, 0
      %v353 = vsel %vm348, %v347, 0
      %355 = vmatprep.subr.bf16.mxu0 0
      %356 = vmatpush1.bf16.xpose.msra.mxu0 %v353
      %357 = vmatprep.subr.bf16.mxu0 0
      %358 = vmatpush1.bf16.xpose.msra.mxu0 0
      %359 = vmatprep.subr.bf16.mxu0 0
      %360 = vmatpush1.bf16.xpose.msra.mxu0 0
      %361 = vmatprep.subr.bf16.mxu0 0
      %362 = vmatpush1.bf16.xpose.msra.mxu0 0
      %363 = vmatprep.subr.bf16.mxu0 0
      %364 = vmatpush1.bf16.xpose.msra.mxu0 0
      %365 = vmatprep.subr.bf16.mxu0 0
      %366 = vmatpush1.bf16.xpose.msra.mxu0 0
      %367 = vmatprep.subr.bf16.mxu0 0
      %368 = vmatpush1.bf16.xpose.msra.mxu0 0
      %369 = vmatprep.subr.bf16.mxu0 0
      %370 = vmatpush1.bf16.xpose.msra.mxu0 0
      %371 = vmatprep.subr.bf16.mxu0 0
      %372 = vmatpush1.bf16.xpose.msra.mxu0 0
      %373 = vmatprep.subr.bf16.mxu0 0
      %374 = vmatpush1.bf16.xpose.msra.mxu0 0
      %375 = vmatprep.subr.bf16.mxu0 0
      %376 = vmatpush1.bf16.xpose.msra.mxu0 0
      %377 = vmatprep.subr.bf16.mxu0 0
      %378 = vmatpush1.bf16.xpose.msra.mxu0 0
      %379 = vmatprep.subr.bf16.mxu0 0
      %380 = vmatpush1.bf16.xpose.msra.mxu0 0
      %381 = vmatprep.subr.bf16.mxu0 0
      %382 = vmatpush1.bf16.xpose.msra.mxu0 0
      %383 = vmatprep.subr.bf16.mxu0 0
      %384 = vmatpush1.bf16.xpose.msra.mxu0 0
      %385 = vmatprep.subr.bf16.mxu0 0
      %386 = vmatpush1.bf16.xpose.msra.mxu0 0
      %387 = vmatprep.mubr.bf16.mxu0 0
      %388 = vmatmul.mubr.bf16.gmra.mrb[0].mxu0 %v350
      %v389 = vpop.f32.mrb[0].mxu0
      %v390 = vadd.f32 0.0, %v389
      %v391 = vpop.f32.mrb[0].mxu0
      %v392 = vpop.f32.mrb[0].mxu0
      %v393 = vadd.f32 0.0, %v392
      %v394 = vpop.f32.mrb[0].mxu0
      %395 = vdwg.mxu0
      %v396 = vmul.f32 %v390, 0.5
      %v397 = vmul.f32 %v393, 0.5
      %v398 = vld [vmem:[%s5] sm:$0xff]
      %v399 = vld [vmem:[%s5 + $0x8] sm:$0xff]
      %v400 = vadd.f32 %v396, %v398
      %v401 = vadd.f32 %v397, %v399
      %vm402 = vcmask 130048
      %v403 = vsel %vm402, %v400, -inf
      %404 = vmax.xlane.f32.xlu0 %v403
      %v405 = vpop.xlane.xlu0 %404
      %v406 = vsel %vm402, %v401, -inf
      %407 = vmax.xlane.f32.xlu0 %v406
      %v408 = vpop.xlane.xlu0 %407
      %v409 = vsub.f32 %v400, %v405
      %v410 = vsub.f32 %v401, %v408
      %v411 = vmul.f32 %v409, 1.442695
      %v412 = vpow.pop %v411
      %v413 = vmul.f32 %v410, 1.442695
      %v414 = vpow.pop %v413
      %v415 = vsel %vm402, %v412, 0.0
      %416 = vadd.xlane.f32.xlu0 %v415
      %v417 = vpop.xlane.xlu0 %416
      %v418 = vsel %vm402, %v414, 0.0
      %419 = vadd.xlane.f32.xlu0 %v418
      %v420 = vpop.xlane.xlu0 %419
      %v421 = vpack.c.bf16 %v414, %v412
      %422 = vrot.lane.b32.xlu0 %v344, 96
      %v423 = vpop.permute.xlu0 %422
      %v426 = vsel %vm402, %v421, 0
      %428 = vmatprep.subr.bf16.mxu0 0
      %429 = vmatpush1.bf16.msra.mxu0 %v423
      %430 = vmatprep.subr.bf16.mxu0 0
      %431 = vmatpush1.bf16.msra.mxu0 0
      %432 = vmatprep.subr.bf16.mxu0 0
      %433 = vmatpush1.bf16.msra.mxu0 0
      %434 = vmatprep.subr.bf16.mxu0 0
      %435 = vmatpush1.bf16.msra.mxu0 0
      %436 = vmatprep.subr.bf16.mxu0 0
      %437 = vmatpush1.bf16.msra.mxu0 0
      %438 = vmatprep.subr.bf16.mxu0 0
      %439 = vmatpush1.bf16.msra.mxu0 0
      %440 = vmatprep.subr.bf16.mxu0 0
      %441 = vmatpush1.bf16.msra.mxu0 0
      %442 = vmatprep.subr.bf16.mxu0 0
      %443 = vmatpush1.bf16.msra.mxu0 0
      %444 = vmatprep.subr.bf16.mxu0 0
      %445 = vmatpush1.bf16.msra.mxu0 0
      %446 = vmatprep.subr.bf16.mxu0 0
      %447 = vmatpush1.bf16.msra.mxu0 0
      %448 = vmatprep.subr.bf16.mxu0 0
      %449 = vmatpush1.bf16.msra.mxu0 0
      %450 = vmatprep.subr.bf16.mxu0 0
      %451 = vmatpush1.bf16.msra.mxu0 0
      %452 = vmatprep.subr.bf16.mxu0 0
      %453 = vmatpush1.bf16.msra.mxu0 0
      %454 = vmatprep.subr.bf16.mxu0 0
      %455 = vmatpush1.bf16.msra.mxu0 0
      %456 = vmatprep.subr.bf16.mxu0 0
      %457 = vmatpush1.bf16.msra.mxu0 0
      %458 = vmatprep.subr.bf16.mxu0 0
      %459 = vmatpush1.bf16.msra.mxu0 0
      %460 = vmatprep.mubr.bf16.mxu0 0
      %461 = vmatmul.mubr.bf16.gmra.mrb[0].mxu0 %v426
      %v462 = vpop.f32.mrb[0].mxu0
      %v463 = vadd.f32 0.0, %v462
      %v464 = vpop.f32.mrb[0].mxu0
      %v465 = vpop.f32.mrb[0].mxu0
      %v466 = vadd.f32 0.0, %v465
      %v467 = vpop.f32.mrb[0].mxu0
      %468 = vdwg.mxu0
      %v469 = vrcp.pop %v417
      %v470 = vrcp.pop %v420
      %v471 = vmul.f32 %v463, %v469
      %v472 = vmul.f32 %v466, %v470
      %vm473 = vcmask 64512
      %474 = vst.msk [vmem:[#allocation2] sm:$0xff] %vm473, %v471
      %475 = vst.msk [vmem:[#allocation2 + $0x8] sm:$0xff] %vm473, %v472
      %476 = vrot.lane.b32.xlu0 %v344, 124
      %v477 = vpop.permute.xlu0 %476
      %478 = vrot.lane.b32.xlu0 %v344, 108
      %v479 = vpop.permute.xlu0 %478
      %v481 = vsel %vm348, %v477, 0
      %v484 = vsel %vm348, %v479, 0
      %486 = vmatprep.subr.bf16.mxu0 0
      %487 = vmatpush1.bf16.xpose.msra.mxu0 %v484
      %488 = vmatprep.subr.bf16.mxu0 0
      %489 = vmatpush1.bf16.xpose.msra.mxu0 0
      %490 = vmatprep.subr.bf16.mxu0 0
      %491 = vmatpush1.bf16.xpose.msra.mxu0 0
      %492 = vmatprep.subr.bf16.mxu0 0
      %493 = vmatpush1.bf16.xpose.msra.mxu0 0
      %494 = vmatprep.subr.bf16.mxu0 0
      %495 = vmatpush1.bf16.xpose.msra.mxu0 0
      %496 = vmatprep.subr.bf16.mxu0 0
      %497 = vmatpush1.bf16.xpose.msra.mxu0 0
      %498 = vmatprep.subr.bf16.mxu0 0
      %499 = vmatpush1.bf16.xpose.msra.mxu0 0
      %500 = vmatprep.subr.bf16.mxu0 0
      %501 = vmatpush1.bf16.xpose.msra.mxu0 0
      %502 = vmatprep.subr.bf16.mxu0 0
      %503 = vmatpush1.bf16.xpose.msra.mxu0 0
      %504 = vmatprep.subr.bf16.mxu0 0
      %505 = vmatpush1.bf16.xpose.msra.mxu0 0
      %506 = vmatprep.subr.bf16.mxu0 0
      %507 = vmatpush1.bf16.xpose.msra.mxu0 0
      %508 = vmatprep.subr.bf16.mxu0 0
      %509 = vmatpush1.bf16.xpose.msra.mxu0 0
      %510 = vmatprep.subr.bf16.mxu0 0
      %511 = vmatpush1.bf16.xpose.msra.mxu0 0
      %512 = vmatprep.subr.bf16.mxu0 0
      %513 = vmatpush1.bf16.xpose.msra.mxu0 0
      %514 = vmatprep.subr.bf16.mxu0 0
      %515 = vmatpush1.bf16.xpose.msra.mxu0 0
      %516 = vmatprep.subr.bf16.mxu0 0
      %517 = vmatpush1.bf16.xpose.msra.mxu0 0
      %518 = vmatprep.mubr.bf16.mxu0 0
      %519 = vmatmul.mubr.bf16.gmra.mrb[0].mxu0 %v481
      %v520 = vpop.f32.mrb[0].mxu0
      %v521 = vadd.f32 0.0, %v520
      %v522 = vpop.f32.mrb[0].mxu0
      %v523 = vpop.f32.mrb[0].mxu0
      %v524 = vadd.f32 0.0, %v523
      %v525 = vpop.f32.mrb[0].mxu0
      %526 = vdwg.mxu0
      %v527 = vmul.f32 %v521, 0.5
      %v528 = vmul.f32 %v524, 0.5
      %s529 = scalar_lea.vmem %s5, 16
      %v530 = vld [vmem:[%s529] sm:$0xff]
      %v531 = vld [vmem:[%s529 + $0x8] sm:$0xff]
      %v532 = vadd.f32 %v527, %v530
      %v533 = vadd.f32 %v528, %v531
      %v534 = vsel %vm402, %v532, -inf
      %535 = vmax.xlane.f32.xlu0 %v534
      %v536 = vpop.xlane.xlu0 %535
      %v537 = vsel %vm402, %v533, -inf
      %538 = vmax.xlane.f32.xlu0 %v537
      %v539 = vpop.xlane.xlu0 %538
      %v540 = vsub.f32 %v532, %v536
      %v541 = vsub.f32 %v533, %v539
      %v542 = vmul.f32 %v540, 1.442695
      %v543 = vpow.pop %v542
      %v544 = vmul.f32 %v541, 1.442695
      %v545 = vpow.pop %v544
      %v546 = vsel %vm402, %v543, 0.0
      %547 = vadd.xlane.f32.xlu0 %v546
      %v548 = vpop.xlane.xlu0 %547
      %v549 = vsel %vm402, %v545, 0.0
      %550 = vadd.xlane.f32.xlu0 %v549
      %v551 = vpop.xlane.xlu0 %550
      %v552 = vpack.c.bf16 %v545, %v543
      %553 = vrot.lane.b32.xlu0 %v344, 88
      %v554 = vpop.permute.xlu0 %553
      %v557 = vsel %vm402, %v552, 0
      %559 = vmatprep.subr.bf16.mxu0 0
      %560 = vmatpush1.bf16.msra.mxu0 %v554
      %561 = vmatprep.subr.bf16.mxu0 0
      %562 = vmatpush1.bf16.msra.mxu0 0
      %563 = vmatprep.subr.bf16.mxu0 0
      %564 = vmatpush1.bf16.msra.mxu0 0
      %565 = vmatprep.subr.bf16.mxu0 0
      %566 = vmatpush1.bf16.msra.mxu0 0
      %567 = vmatprep.subr.bf16.mxu0 0
      %568 = vmatpush1.bf16.msra.mxu0 0
      %569 = vmatprep.subr.bf16.mxu0 0
      %570 = vmatpush1.bf16.msra.mxu0 0
      %571 = vmatprep.subr.bf16.mxu0 0
      %572 = vmatpush1.bf16.msra.mxu0 0
      %573 = vmatprep.subr.bf16.mxu0 0
      %574 = vmatpush1.bf16.msra.mxu0 0
      %575 = vmatprep.subr.bf16.mxu0 0
      %576 = vmatpush1.bf16.msra.mxu0 0
      %577 = vmatprep.subr.bf16.mxu0 0
      %578 = vmatpush1.bf16.msra.mxu0 0
      %579 = vmatprep.subr.bf16.mxu0 0
      %580 = vmatpush1.bf16.msra.mxu0 0
      %581 = vmatprep.subr.bf16.mxu0 0
      %582 = vmatpush1.bf16.msra.mxu0 0
      %583 = vmatprep.subr.bf16.mxu0 0
      %584 = vmatpush1.bf16.msra.mxu0 0
      %585 = vmatprep.subr.bf16.mxu0 0
      %586 = vmatpush1.bf16.msra.mxu0 0
      %587 = vmatprep.subr.bf16.mxu0 0
      %588 = vmatpush1.bf16.msra.mxu0 0
      %589 = vmatprep.subr.bf16.mxu0 0
      %590 = vmatpush1.bf16.msra.mxu0 0
      %591 = vmatprep.mubr.bf16.mxu0 0
      %592 = vmatmul.mubr.bf16.gmra.mrb[0].mxu0 %v557
      %v593 = vpop.f32.mrb[0].mxu0
      %v594 = vadd.f32 0.0, %v593
      %v595 = vpop.f32.mrb[0].mxu0
      %v596 = vpop.f32.mrb[0].mxu0
      %v597 = vadd.f32 0.0, %v596
      %v598 = vpop.f32.mrb[0].mxu0
      %599 = vdwg.mxu0
      %v600 = vrcp.pop %v548
      %v601 = vrcp.pop %v551
      %v602 = vmul.f32 %v594, %v600
      %v603 = vmul.f32 %v597, %v601
      %606 = vrot.lane.b32.xlu0 %v602, 8
      %v607 = vpop.permute.xlu0 %606
      %608 = vrot.lane.b32.xlu0 %v603, 8
      %v609 = vpop.permute.xlu0 %608
      %vm612 = vcmask 130112
      %613 = vst.msk [vmem:[#allocation2] sm:$0xff] %vm612, %v607
      %614 = vst.msk [vmem:[#allocation2 + $0x8] sm:$0xff] %vm612, %v609
      %615 = vrot.lane.b32.xlu0 %v344, 120
      %v616 = vpop.permute.xlu0 %615
      %617 = vrot.lane.b32.xlu0 %v344, 104
      %v618 = vpop.permute.xlu0 %617
      %v620 = vsel %vm348, %v616, 0
      %v623 = vsel %vm348, %v618, 0
      %625 = vmatprep.subr.bf16.mxu0 0
      %626 = vmatpush1.bf16.xpose.msra.mxu0 %v623
      %627 = vmatprep.subr.bf16.mxu0 0
      %628 = vmatpush1.bf16.xpose.msra.mxu0 0
      %629 = vmatprep.subr.bf16.mxu0 0
      %630 = vmatpush1.bf16.xpose.msra.mxu0 0
      %631 = vmatprep.subr.bf16.mxu0 0
      %632 = vmatpush1.bf16.xpose.msra.mxu0 0
      %633 = vmatprep.subr.bf16.mxu0 0
      %634 = vmatpush1.bf16.xpose.msra.mxu0 0
      %635 = vmatprep.subr.bf16.mxu0 0
      %636 = vmatpush1.bf16.xpose.msra.mxu0 0
      %637 = vmatprep.subr.bf16.mxu0 0
      %638 = vmatpush1.bf16.xpose.msra.mxu0 0
      %639 = vmatprep.subr.bf16.mxu0 0
      %640 = vmatpush1.bf16.xpose.msra.mxu0 0
      %641 = vmatprep.subr.bf16.mxu0 0
      %642 = vmatpush1.bf16.xpose.msra.mxu0 0
      %643 = vmatprep.subr.bf16.mxu0 0
      %644 = vmatpush1.bf16.xpose.msra.mxu0 0
      %645 = vmatprep.subr.bf16.mxu0 0
      %646 = vmatpush1.bf16.xpose.msra.mxu0 0
      %647 = vmatprep.subr.bf16.mxu0 0
      %648 = vmatpush1.bf16.xpose.msra.mxu0 0
      %649 = vmatprep.subr.bf16.mxu0 0
      %650 = vmatpush1.bf16.xpose.msra.mxu0 0
      %651 = vmatprep.subr.bf16.mxu0 0
      %652 = vmatpush1.bf16.xpose.msra.mxu0 0
      %653 = vmatprep.subr.bf16.mxu0 0
      %654 = vmatpush1.bf16.xpose.msra.mxu0 0
      %655 = vmatprep.subr.bf16.mxu0 0
      %656 = vmatpush1.bf16.xpose.msra.mxu0 0
      %657 = vmatprep.mubr.bf16.mxu0 0
      %658 = vmatmul.mubr.bf16.gmra.mrb[0].mxu0 %v620
      %v659 = vpop.f32.mrb[0].mxu0
      %v660 = vadd.f32 0.0, %v659
      %v661 = vpop.f32.mrb[0].mxu0
      %v662 = vpop.f32.mrb[0].mxu0
      %v663 = vadd.f32 0.0, %v662
      %v664 = vpop.f32.mrb[0].mxu0
      %665 = vdwg.mxu0
      %v666 = vmul.f32 %v660, 0.5
      %v667 = vmul.f32 %v663, 0.5
      %s668 = scalar_lea.vmem %s5, 32
      %v669 = vld [vmem:[%s668] sm:$0xff]
      %v670 = vld [vmem:[%s668 + $0x8] sm:$0xff]
      %v671 = vadd.f32 %v666, %v669
      %v672 = vadd.f32 %v667, %v670
      %v673 = vsel %vm402, %v671, -inf
      %674 = vmax.xlane.f32.xlu0 %v673
      %v675 = vpop.xlane.xlu0 %674
      %v676 = vsel %vm402, %v672, -inf
      %677 = vmax.xlane.f32.xlu0 %v676
      %v678 = vpop.xlane.xlu0 %677
      %v679 = vsub.f32 %v671, %v675
      %v680 = vsub.f32 %v672, %v678
      %v681 = vmul.f32 %v679, 1.442695
      %v682 = vpow.pop %v681
      %v683 = vmul.f32 %v680, 1.442695
      %v684 = vpow.pop %v683
      %v685 = vsel %vm402, %v682, 0.0
      %686 = vadd.xlane.f32.xlu0 %v685
      %v687 = vpop.xlane.xlu0 %686
      %v688 = vsel %vm402, %v684, 0.0
      %689 = vadd.xlane.f32.xlu0 %v688
      %v690 = vpop.xlane.xlu0 %689
      %v691 = vpack.c.bf16 %v684, %v682
      %692 = vrot.lane.b32.xlu0 %v344, 80
      %v693 = vpop.permute.xlu0 %692
      %v696 = vsel %vm402, %v691, 0
      %698 = vmatprep.subr.bf16.mxu0 0
      %699 = vmatpush1.bf16.msra.mxu0 %v693
      %700 = vmatprep.subr.bf16.mxu0 0
      %701 = vmatpush1.bf16.msra.mxu0 0
      %702 = vmatprep.subr.bf16.mxu0 0
      %703 = vmatpush1.bf16.msra.mxu0 0
      %704 = vmatprep.subr.bf16.mxu0 0
      %705 = vmatpush1.bf16.msra.mxu0 0
      %706 = vmatprep.subr.bf16.mxu0 0
      %707 = vmatpush1.bf16.msra.mxu0 0
      %708 = vmatprep.subr.bf16.mxu0 0
      %709 = vmatpush1.bf16.msra.mxu0 0
      %710 = vmatprep.subr.bf16.mxu0 0
      %711 = vmatpush1.bf16.msra.mxu0 0
      %712 = vmatprep.subr.bf16.mxu0 0
      %713 = vmatpush1.bf16.msra.mxu0 0
      %714 = vmatprep.subr.bf16.mxu0 0
      %715 = vmatpush1.bf16.msra.mxu0 0
      %716 = vmatprep.subr.bf16.mxu0 0
      %717 = vmatpush1.bf16.msra.mxu0 0
      %718 = vmatprep.subr.bf16.mxu0 0
      %719 = vmatpush1.bf16.msra.mxu0 0
      %720 = vmatprep.subr.bf16.mxu0 0
      %721 = vmatpush1.bf16.msra.mxu0 0
      %722 = vmatprep.subr.bf16.mxu0 0
      %723 = vmatpush1.bf16.msra.mxu0 0
      %724 = vmatprep.subr.bf16.mxu0 0
      %725 = vmatpush1.bf16.msra.mxu0 0
      %726 = vmatprep.subr.bf16.mxu0 0
      %727 = vmatpush1.bf16.msra.mxu0 0
      %728 = vmatprep.subr.bf16.mxu0 0
      %729 = vmatpush1.bf16.msra.mxu0 0
      %730 = vmatprep.mubr.bf16.mxu0 0
      %731 = vmatmul.mubr.bf16.gmra.mrb[0].mxu0 %v696
      %v732 = vpop.f32.mrb[0].mxu0
      %v733 = vadd.f32 0.0, %v732
      %v734 = vpop.f32.mrb[0].mxu0
      %v735 = vpop.f32.mrb[0].mxu0
      %v736 = vadd.f32 0.0, %v735
      %v737 = vpop.f32.mrb[0].mxu0
      %738 = vdwg.mxu0
      %v739 = vrcp.pop %v687
      %v740 = vrcp.pop %v690
      %v741 = vmul.f32 %v733, %v739
      %v742 = vmul.f32 %v736, %v740
      %745 = vrot.lane.b32.xlu0 %v741, 16
      %v746 = vpop.permute.xlu0 %745
      %747 = vrot.lane.b32.xlu0 %v742, 16
      %v748 = vpop.permute.xlu0 %747
      %vm751 = vcmask 195712
      %752 = vst.msk [vmem:[#allocation2] sm:$0xff] %vm751, %v746
      %753 = vst.msk [vmem:[#allocation2 + $0x8] sm:$0xff] %vm751, %v748
      %754 = vrot.lane.b32.xlu0 %v344, 116
      %v755 = vpop.permute.xlu0 %754
      %756 = vrot.lane.b32.xlu0 %v344, 100
      %v757 = vpop.permute.xlu0 %756
      %v759 = vsel %vm348, %v755, 0
      %v762 = vsel %vm348, %v757, 0
      %764 = vmatprep.subr.bf16.mxu0 0
      %765 = vmatpush1.bf16.xpose.msra.mxu0 %v762
      %766 = vmatprep.subr.bf16.mxu0 0
      %767 = vmatpush1.bf16.xpose.msra.mxu0 0
      %768 = vmatprep.subr.bf16.mxu0 0
      %769 = vmatpush1.bf16.xpose.msra.mxu0 0
      %770 = vmatprep.subr.bf16.mxu0 0
      %771 = vmatpush1.bf16.xpose.msra.mxu0 0
      %772 = vmatprep.subr.bf16.mxu0 0
      %773 = vmatpush1.bf16.xpose.msra.mxu0 0
      %774 = vmatprep.subr.bf16.mxu0 0
      %775 = vmatpush1.bf16.xpose.msra.mxu0 0
      %776 = vmatprep.subr.bf16.mxu0 0
      %777 = vmatpush1.bf16.xpose.msra.mxu0 0
      %778 = vmatprep.subr.bf16.mxu0 0
      %779 = vmatpush1.bf16.xpose.msra.mxu0 0
      %780 = vmatprep.subr.bf16.mxu0 0
      %781 = vmatpush1.bf16.xpose.msra.mxu0 0
      %782 = vmatprep.subr.bf16.mxu0 0
      %783 = vmatpush1.bf16.xpose.msra.mxu0 0
      %784 = vmatprep.subr.bf16.mxu0 0
      %785 = vmatpush1.bf16.xpose.msra.mxu0 0
      %786 = vmatprep.subr.bf16.mxu0 0
      %787 = vmatpush1.bf16.xpose.msra.mxu0 0
      %788 = vmatprep.subr.bf16.mxu0 0
      %789 = vmatpush1.bf16.xpose.msra.mxu0 0
      %790 = vmatprep.subr.bf16.mxu0 0
      %791 = vmatpush1.bf16.xpose.msra.mxu0 0
      %792 = vmatprep.subr.bf16.mxu0 0
      %793 = vmatpush1.bf16.xpose.msra.mxu0 0
      %794 = vmatprep.subr.bf16.mxu0 0
      %795 = vmatpush1.bf16.xpose.msra.mxu0 0
      %796 = vmatprep.mubr.bf16.mxu0 0
      %797 = vmatmul.mubr.bf16.gmra.mrb[0].mxu0 %v759
      %v798 = vpop.f32.mrb[0].mxu0
      %v799 = vadd.f32 0.0, %v798
      %v800 = vpop.f32.mrb[0].mxu0
      %v801 = vpop.f32.mrb[0].mxu0
      %v802 = vadd.f32 0.0, %v801
      %v803 = vpop.f32.mrb[0].mxu0
      %804 = vdwg.mxu0
      %v805 = vmul.f32 %v799, 0.5
      %v806 = vmul.f32 %v802, 0.5
      %s807 = scalar_lea.vmem %s5, 48
      %v808 = vld [vmem:[%s807] sm:$0xff]
      %v809 = vld [vmem:[%s807 + $0x8] sm:$0xff]
      %v810 = vadd.f32 %v805, %v808
      %v811 = vadd.f32 %v806, %v809
      %v812 = vsel %vm402, %v810, -inf
      %813 = vmax.xlane.f32.xlu0 %v812
      %v814 = vpop.xlane.xlu0 %813
      %v815 = vsel %vm402, %v811, -inf
      %816 = vmax.xlane.f32.xlu0 %v815
      %v817 = vpop.xlane.xlu0 %816
      %v818 = vsub.f32 %v810, %v814
      %v819 = vsub.f32 %v811, %v817
      %v820 = vmul.f32 %v818, 1.442695
      %v821 = vpow.pop %v820
      %v822 = vmul.f32 %v819, 1.442695
      %v823 = vpow.pop %v822
      %v824 = vsel %vm402, %v821, 0.0
      %825 = vadd.xlane.f32.xlu0 %v824
      %v826 = vpop.xlane.xlu0 %825
      %v827 = vsel %vm402, %v823, 0.0
      %828 = vadd.xlane.f32.xlu0 %v827
      %v829 = vpop.xlane.xlu0 %828
      %v830 = vpack.c.bf16 %v823, %v821
      %831 = vrot.lane.b32.xlu0 %v344, 72
      %v832 = vpop.permute.xlu0 %831
      %v835 = vsel %vm402, %v830, 0
      %837 = vmatprep.subr.bf16.mxu0 0
      %838 = vmatpush1.bf16.msra.mxu0 %v832
      %839 = vmatprep.subr.bf16.mxu0 0
      %840 = vmatpush1.bf16.msra.mxu0 0
      %841 = vmatprep.subr.bf16.mxu0 0
      %842 = vmatpush1.bf16.msra.mxu0 0
      %843 = vmatprep.subr.bf16.mxu0 0
      %844 = vmatpush1.bf16.msra.mxu0 0
      %845 = vmatprep.subr.bf16.mxu0 0
      %846 = vmatpush1.bf16.msra.mxu0 0
      %847 = vmatprep.subr.bf16.mxu0 0
      %848 = vmatpush1.bf16.msra.mxu0 0
      %849 = vmatprep.subr.bf16.mxu0 0
      %850 = vmatpush1.bf16.msra.mxu0 0
      %851 = vmatprep.subr.bf16.mxu0 0
      %852 = vmatpush1.bf16.msra.mxu0 0
      %853 = vmatprep.subr.bf16.mxu0 0
      %854 = vmatpush1.bf16.msra.mxu0 0
      %855 = vmatprep.subr.bf16.mxu0 0
      %856 = vmatpush1.bf16.msra.mxu0 0
      %857 = vmatprep.subr.bf16.mxu0 0
      %858 = vmatpush1.bf16.msra.mxu0 0
      %859 = vmatprep.subr.bf16.mxu0 0
      %860 = vmatpush1.bf16.msra.mxu0 0
      %861 = vmatprep.subr.bf16.mxu0 0
      %862 = vmatpush1.bf16.msra.mxu0 0
      %863 = vmatprep.subr.bf16.mxu0 0
      %864 = vmatpush1.bf16.msra.mxu0 0
      %865 = vmatprep.subr.bf16.mxu0 0
      %866 = vmatpush1.bf16.msra.mxu0 0
      %867 = vmatprep.subr.bf16.mxu0 0
      %868 = vmatpush1.bf16.msra.mxu0 0
      %869 = vmatprep.mubr.bf16.mxu0 0
      %870 = vmatmul.mubr.bf16.gmra.mrb[0].mxu0 %v835
      %v871 = vpop.f32.mrb[0].mxu0
      %v872 = vadd.f32 0.0, %v871
      %v873 = vpop.f32.mrb[0].mxu0
      %v874 = vpop.f32.mrb[0].mxu0
      %v875 = vadd.f32 0.0, %v874
      %v876 = vpop.f32.mrb[0].mxu0
      %877 = vdwg.mxu0
      %v878 = vrcp.pop %v826
      %v879 = vrcp.pop %v829
      %v880 = vmul.f32 %v872, %v878
      %v881 = vmul.f32 %v875, %v879
      %884 = vrot.lane.b32.xlu0 %v880, 24
      %v885 = vpop.permute.xlu0 %884
      %886 = vrot.lane.b32.xlu0 %v881, 24
      %v887 = vpop.permute.xlu0 %886
      %vm890 = vcmask 261312
      %891 = vst.msk [vmem:[#allocation2] sm:$0xff] %vm890, %v885
      %892 = vst.msk [vmem:[#allocation2 + $0x8] sm:$0xff] %vm890, %v887
      %v893 = vld [vmem:[#allocation2] sm:$0xff]
      %v894 = vld [vmem:[#allocation2 + $0x8] sm:$0xff]
      %v895 = vpack.c.bf16 %v894, %v893
      %v896 = vld [vmem:[%s3] sm:$0xf]
      %v897 = vld [vmem:[%s3 + $0x4] sm:$0xf]
      %v898 = vld [vmem:[%s3 + $0x8] sm:$0xf]
      %v899 = vld [vmem:[%s3 + $0xc] sm:$0xf]
      %v900 = vld [vmem:[%s4] sm:$0x1]
      %v902 = vlaneseq
      %v903 = vshrl.u32 %v902, 7
      %v904 = vsub.s32 0, %v903
      %v905 = vrot.slane %v900, %v904
      %v911 = vunpack.c.l.b16 %v896
      %v912 = vunpack.c.l.b16 %v897
      %v913 = vunpack.c.l.b16 %v898
      %v914 = vunpack.c.l.b16 %v899
      %v915 = vpack.c.b16 %v912, %v911
      %v916 = vpack.c.b16 %v914, %v913
      %vm919 = vcmask 261120
      %v921 = vsel %vm919, %v895, 0
      %923 = vmatprep.subr.bf16.mxu0 0
      %924 = vmatpush1.bf16.msra.mxu0 %v915
      %925 = vmatprep.subr.bf16.mxu0 0
      %926 = vmatpush1.bf16.msra.mxu0 %v916
      %927 = vmatprep.subr.bf16.mxu0 0
      %928 = vmatpush1.bf16.msra.mxu0 0
      %929 = vmatprep.subr.bf16.mxu0 0
      %930 = vmatpush1.bf16.msra.mxu0 0
      %931 = vmatprep.subr.bf16.mxu0 0
      %932 = vmatpush1.bf16.msra.mxu0 0
      %933 = vmatprep.subr.bf16.mxu0 0
      %934 = vmatpush1.bf16.msra.mxu0 0
      %935 = vmatprep.subr.bf16.mxu0 0
      %936 = vmatpush1.bf16.msra.mxu0 0
      %937 = vmatprep.subr.bf16.mxu0 0
      %938 = vmatpush1.bf16.msra.mxu0 0
      %939 = vmatprep.subr.bf16.mxu0 0
      %940 = vmatpush1.bf16.msra.mxu0 0
      %941 = vmatprep.subr.bf16.mxu0 0
      %942 = vmatpush1.bf16.msra.mxu0 0
      %943 = vmatprep.subr.bf16.mxu0 0
      %944 = vmatpush1.bf16.msra.mxu0 0
      %945 = vmatprep.subr.bf16.mxu0 0
      %946 = vmatpush1.bf16.msra.mxu0 0
      %947 = vmatprep.subr.bf16.mxu0 0
      %948 = vmatpush1.bf16.msra.mxu0 0
      %949 = vmatprep.subr.bf16.mxu0 0
      %950 = vmatpush1.bf16.msra.mxu0 0
      %951 = vmatprep.subr.bf16.mxu0 0
      %952 = vmatpush1.bf16.msra.mxu0 0
      %953 = vmatprep.subr.bf16.mxu0 0
      %954 = vmatpush1.bf16.msra.mxu0 0
      %955 = vmatprep.mubr.bf16.mxu0 0
      %956 = vmatmul.mubr.bf16.gmra.mrb[0].mxu0 %v921
      %v957 = vpop.f32.mrb[0].mxu0
      %v958 = vadd.f32 %v905, %v957
      %v959 = vpop.f32.mrb[0].mxu0
      %v960 = vpop.f32.mrb[0].mxu0
      %v961 = vadd.f32 %v905, %v960
      %v962 = vpop.f32.mrb[0].mxu0
      %963 = vdwg.mxu0
      %964 = vst.msk [vmem:[%s251] sm:$0xff] %vm919, %v958
      %965 = vst.msk [vmem:[%s251 + $0x8] sm:$0xff] %vm919, %v961
      %p966 = scmp.lt.s32.totalorder %s17, 1
      %s967 = scalar_select %p966, %s17, 1
      %s968 = smul.addr %s967, 2
      %s969 = smul.addr %s968, 8
      %s970 = scalar_lea.vmem %s6, %s969
      // Predicated region
      $region45: #{parallel_model_forward.6} parent=43 // pred_check
        %p971 = pneg %p166
      $region46: #{parallel_model_forward.6} parent=43 // pred_check_branch
        %973 = sbr.rel (%p971) target = $region48
      $region47: #{parallel_model_forward.6} parent=43 // pred_region
        _
      $region48: #{parallel_model_forward.6} parent=43 // pred_fallthru
        _
    $region44: #{parallel_model_forward.6} parent=5 // pred_fallthru
      _
    %p974 = scmp.le.s32.totalorder 2, %s12
    // Predicated region
    $region49: #{parallel_model_forward.6} parent=5 // pred_check
      %p975 = pneg %p974
    $region50: #{parallel_model_forward.6} parent=5 // pred_check_branch
      %977 = sbr.rel (%p975) target = $region52
    $region51: #{parallel_model_forward.6} parent=5 // pred_region
      %s978 = ssub.s32 %s12, 2
      // Predicated region
      $region53: #{parallel_model_forward.6} parent=51 // pred_check
        %p979 = pneg %p172
      $region54: #{parallel_model_forward.6} parent=51 // pred_check_branch
        %981 = sbr.rel (%p979) target = $region56
      $region55: #{parallel_model_forward.6} parent=51 // pred_region
        %p982 = scmp.lt.s32.totalorder %s18, 1
        %s983 = scalar_select %p982, %s18, 1
        %s984 = smul.addr %s983, 2
        %s985 = smul.addr %s984, 8
        %s986 = scalar_lea.vmem %s6, %s985
      $region56: #{parallel_model_forward.6} parent=51 // pred_fallthru
        _
    $region52: #{parallel_model_forward.6} parent=5 // pred_fallthru
      _
  $region6: #{parallel_model_forward.6} parent=0 // loop_footer
    %s16 = sadd.s32 1, %s12
  $region7: #{parallel_model_forward.6} parent=0 // loop_footer_branch
    %11 = sbr.rel target = $region3
  $region8: #{parallel_model_forward.6} parent=0 // loop_exit
    _

// kernel: parallel_model_forward.5
$region0: #{parallel_model_forward.5}
  #allocation0 [shape = 'u32[]', space=smem, size = 0x4, offset = 0x4, fixed_abs, tag = 'smem constant byte address 0x4 - core index']
  #allocation1 [shape = 'u32[144,128]{1,0:T(1,128)}', space=vmem, size = 0x12000, scoped, tag = 'internal scratch']
  #allocation2 [shape = 'f32[16,32]{1,0:T(8,128)}', space=vmem, size = 0x2000, scoped, tag = 'scratch operand']
  %s0 = inlined_call_operand.vmem [shape: bf16[2,16,32], index: 0, kind: input, shape index: {}]
  %s1 = inlined_call_operand.vmem [shape: bf16[32,64], index: 1, kind: input, shape index: {}]
  %s2 = inlined_call_operand.vmem [shape: f32[1,64], index: 2, kind: input, shape index: {}]
  %s3 = inlined_call_operand.vmem [shape: bf16[32,32], index: 3, kind: input, shape index: {}]
  %s4 = inlined_call_operand.vmem [shape: f32[1,32], index: 4, kind: input, shape index: {}]
  %s5 = inlined_call_operand.vmem [shape: f32[4,16,16], index: 5, kind: input, shape index: {}]
  %s6 = inlined_call_operand.vmem [shape: f32[2,16,32], index: 6, kind: output, shape index: {}]
  %s7 = sld [smem:[#allocation0]]
  $region57: #{parallel_model_forward.5} parent=0
    _
  %s9 = ssub.s32 1, %s7
  %s10 = scalar_select 0, %s9, %s7
  loop: start=0, step=1, limit=4
  $region2: #{parallel_model_forward.5} parent=0 // loop_pre_header
    _
  $region3: #{parallel_model_forward.5} parent=0 // loop_header
    %s12 = sphi 0, %s16
    %p13 = scmp.ge.s32.totalorder %s12, 4
    %s22 = sphi 0, %s24
    %s25 = sphi 0, %s22
    %s26 = sphi 0, %s25
    %s42 = sphi 0, %s26
    %s46 = sphi 0, %s46
    %s48 = sphi 0, %s46
    %s49 = sphi 0, %s48
    %s63 = sphi 0, %s49
    %s67 = sphi 0, %s67
    %s69 = sphi 0, %s67
    %s70 = sphi 0, %s69
    %s84 = sphi 0, %s70
    %s88 = sphi 0, %s88
    %s90 = sphi 0, %s88
    %s91 = sphi 0, %s90
    %s105 = sphi 0, %s91
    %s109 = sphi 0, %s109
    %s111 = sphi 0, %s109
    %s112 = sphi 0, %s111
    %s126 = sphi 0, %s112
    %s130 = sphi 0, %s130
    %s132 = sphi 0, %s130
    %s133 = sphi 0, %s132
    %s147 = sphi 0, %s133
    %s153 = sphi 0, %s155
    %s156 = sphi 0, %s153
    %s157 = sphi 0, %s156
    %s173 = sphi 0, %s157
  $region4: #{parallel_model_forward.5} parent=0 // loop_header_branch
    %15 = sbr.rel (%p13) target = $region8
  $region5: #{parallel_model_forward.5} parent=0 // loop_body
    %s17 = ssub.s32 %s12, 1
    %s18 = ssub.s32 %s12, 2
    %s19 = sadd.s32 %s12, 1
    %s20 = ssub.s32 %s12, %s19
    %p21 = scmp.eq.s32.totalorder %s20, 0
    %s23 = sadd.s32 %s22, 1
    %s24 = scalar_select %p21, %s22, %s23
    %p27 = pneg %p21
    %p28 = scmp.eq.s32.totalorder %s12, 1
    %p29 = por %p27, %p28
    %p30 = scmp.ne.s32.totalorder %s22, %s25
    %p31 = scmp.eq.s32.totalorder %s12, 0
    %p32 = por %p30, %p31
    %p33 = scmp.ne.s32.totalorder %s22, %s25
    %p34 = scmp.eq.s32.totalorder %s17, 1
    %p35 = por %p33, %p34
    %p36 = scmp.ne.s32.totalorder %s25, %s26
    %p37 = scmp.eq.s32.totalorder %s17, 0
    %p38 = por %p36, %p37
    %p39 = scmp.ne.s32.totalorder %s25, %s26
    %p40 = scmp.eq.s32.totalorder %s18, 1
    %p41 = por %p39, %p40
    %p43 = scmp.ne.s32.totalorder %s26, %s42
    %p44 = scmp.eq.s32.totalorder %s18, 0
    %p45 = por %p43, %p44
    %s47 = sadd.s32 %s46, 1
    %p50 = scmp.eq.s32.totalorder %s12, 1
    %p51 = scmp.ne.s32.totalorder %s46, %s48
    %p52 = scmp.eq.s32.totalorder %s12, 0
    %p53 = por %p51, %p52
    %p54 = scmp.ne.s32.totalorder %s46, %s48
    %p55 = scmp.eq.s32.totalorder %s17, 1
    %p56 = por %p54, %p55
    %p57 = scmp.ne.s32.totalorder %s48, %s49
    %p58 = scmp.eq.s32.totalorder %s17, 0
    %p59 = por %p57, %p58
    %p60 = scmp.ne.s32.totalorder %s48, %s49
    %p61 = scmp.eq.s32.totalorder %s18, 1
    %p62 = por %p60, %p61
    %p64 = scmp.ne.s32.totalorder %s49, %s63
    %p65 = scmp.eq.s32.totalorder %s18, 0
    %p66 = por %p64, %p65
    %s68 = sadd.s32 %s67, 1
    %p71 = scmp.eq.s32.totalorder %s12, 1
    %p72 = scmp.ne.s32.totalorder %s67, %s69
    %p73 = scmp.eq.s32.totalorder %s12, 0
    %p74 = por %p72, %p73
    %p75 = scmp.ne.s32.totalorder %s67, %s69
    %p76 = scmp.eq.s32.totalorder %s17, 1
    %p77 = por %p75, %p76
    %p78 = scmp.ne.s32.totalorder %s69, %s70
    %p79 = scmp.eq.s32.totalorder %s17, 0
    %p80 = por %p78, %p79
    %p81 = scmp.ne.s32.totalorder %s69, %s70
    %p82 = scmp.eq.s32.totalorder %s18, 1
    %p83 = por %p81, %p82
    %p85 = scmp.ne.s32.totalorder %s70, %s84
    %p86 = scmp.eq.s32.totalorder %s18, 0
    %p87 = por %p85, %p86
    %s89 = sadd.s32 %s88, 1
    %p92 = scmp.eq.s32.totalorder %s12, 1
    %p93 = scmp.ne.s32.totalorder %s88, %s90
    %p94 = scmp.eq.s32.totalorder %s12, 0
    %p95 = por %p93, %p94
    %p96 = scmp.ne.s32.totalorder %s88, %s90
    %p97 = scmp.eq.s32.totalorder %s17, 1
    %p98 = por %p96, %p97
    %p99 = scmp.ne.s32.totalorder %s90, %s91
    %p100 = scmp.eq.s32.totalorder %s17, 0
    %p101 = por %p99, %p100
    %p102 = scmp.ne.s32.totalorder %s90, %s91
    %p103 = scmp.eq.s32.totalorder %s18, 1
    %p104 = por %p102, %p103
    %p106 = scmp.ne.s32.totalorder %s91, %s105
    %p107 = scmp.eq.s32.totalorder %s18, 0
    %p108 = por %p106, %p107
    %s110 = sadd.s32 %s109, 1
    %p113 = scmp.eq.s32.totalorder %s12, 1
    %p114 = scmp.ne.s32.totalorder %s109, %s111
    %p115 = scmp.eq.s32.totalorder %s12, 0
    %p116 = por %p114, %p115
    %p117 = scmp.ne.s32.totalorder %s109, %s111
    %p118 = scmp.eq.s32.totalorder %s17, 1
    %p119 = por %p117, %p118
    %p120 = scmp.ne.s32.totalorder %s111, %s112
    %p121 = scmp.eq.s32.totalorder %s17, 0
    %p122 = por %p120, %p121
    %p123 = scmp.ne.s32.totalorder %s111, %s112
    %p124 = scmp.eq.s32.totalorder %s18, 1
    %p125 = por %p123, %p124
    %p127 = scmp.ne.s32.totalorder %s112, %s126
    %p128 = scmp.eq.s32.totalorder %s18, 0
    %p129 = por %p127, %p128
    %s131 = sadd.s32 %s130, 1
    %p134 = scmp.eq.s32.totalorder %s12, 1
    %p135 = scmp.ne.s32.totalorder %s130, %s132
    %p136 = scmp.eq.s32.totalorder %s12, 0
    %p137 = por %p135, %p136
    %p138 = scmp.ne.s32.totalorder %s130, %s132
    %p139 = scmp.eq.s32.totalorder %s17, 1
    %p140 = por %p138, %p139
    %p141 = scmp.ne.s32.totalorder %s132, %s133
    %p142 = scmp.eq.s32.totalorder %s17, 0
    %p143 = por %p141, %p142
    %p144 = scmp.ne.s32.totalorder %s132, %s133
    %p145 = scmp.eq.s32.totalorder %s18, 1
    %p146 = por %p144, %p145
    %p148 = scmp.ne.s32.totalorder %s133, %s147
    %p149 = scmp.eq.s32.totalorder %s18, 0
    %p150 = por %p148, %p149
    %s151 = ssub.s32 %s12, %s19
    %p152 = scmp.eq.s32.totalorder %s151, 0
    %s154 = sadd.s32 %s153, 1
    %s155 = scalar_select %p152, %s153, %s154
    %p158 = pneg %p152
    %p159 = scmp.eq.s32.totalorder %s12, 1
    %p160 = por %p158, %p159
    %p161 = scmp.ne.s32.totalorder %s153, %s156
    %p162 = scmp.eq.s32.totalorder %s12, 0
    %p163 = por %p161, %p162
    %p164 = scmp.ne.s32.totalorder %s153, %s156
    %p165 = scmp.eq.s32.totalorder %s17, 1
    %p166 = por %p164, %p165
    %p167 = scmp.ne.s32.totalorder %s156, %s157
    %p168 = scmp.eq.s32.totalorder %s17, 0
    %p169 = por %p167, %p168
    %p170 = scmp.ne.s32.totalorder %s156, %s157
    %p171 = scmp.eq.s32.totalorder %s18, 1
    %p172 = por %p170, %p171
    %p174 = scmp.ne.s32.totalorder %s157, %s173
    %p175 = scmp.eq.s32.totalorder %s18, 0
    %p176 = por %p174, %p175
    %p177 = scmp.le.s32.totalorder 1, %s12
    %p178 = scmp.lt.s32.totalorder %s12, 3
    %p179 = pnand %p177, %p178
    %p180 = pneg %p179
    // Predicated region
    $region9: #{parallel_model_forward.5} parent=5 // pred_check
      _
    $region10: #{parallel_model_forward.5} parent=5 // pred_check_branch
      %182 = sbr.rel (%p179) target = $region12
    $region11: #{parallel_model_forward.5} parent=5 // pred_region
      %s183 = ssub.s32 %s12, 1
      // Predicated region
      $region13: #{parallel_model_forward.5} parent=11 // pred_check
        %p184 = pneg %p59
      $region14: #{parallel_model_forward.5} parent=11 // pred_check_branch
        %186 = sbr.rel (%p184) target = $region16
      $region15: #{parallel_model_forward.5} parent=11 // pred_region
        _
      $region16: #{parallel_model_forward.5} parent=11 // pred_fallthru
        _
      // Predicated region
      $region17: #{parallel_model_forward.5} parent=11 // pred_check
        %p187 = pneg %p80
      $region18: #{parallel_model_forward.5} parent=11 // pred_check_branch
        %189 = sbr.rel (%p187) target = $region20
      $region19: #{parallel_model_forward.5} parent=11 // pred_region
        _
      $region20: #{parallel_model_forward.5} parent=11 // pred_fallthru
        _
      // Predicated region
      $region21: #{parallel_model_forward.5} parent=11 // pred_check
        %p190 = pneg %p101
      $region22: #{parallel_model_forward.5} parent=11 // pred_check_branch
        %192 = sbr.rel (%p190) target = $region24
      $region23: #{parallel_model_forward.5} parent=11 // pred_region
        _
      $region24: #{parallel_model_forward.5} parent=11 // pred_fallthru
        _
      // Predicated region
      $region25: #{parallel_model_forward.5} parent=11 // pred_check
        %p193 = pneg %p122
      $region26: #{parallel_model_forward.5} parent=11 // pred_check_branch
        %195 = sbr.rel (%p193) target = $region28
      $region27: #{parallel_model_forward.5} parent=11 // pred_region
        _
      $region28: #{parallel_model_forward.5} parent=11 // pred_fallthru
        _
      // Predicated region
      $region29: #{parallel_model_forward.5} parent=11 // pred_check
        %p196 = pneg %p143
      $region30: #{parallel_model_forward.5} parent=11 // pred_check_branch
        %198 = sbr.rel (%p196) target = $region32
      $region31: #{parallel_model_forward.5} parent=11 // pred_region
        _
      $region32: #{parallel_model_forward.5} parent=11 // pred_fallthru
        _
    $region12: #{parallel_model_forward.5} parent=5 // pred_fallthru
      _
    %p199 = scmp.lt.s32.totalorder %s12, 2
    // Predicated region
    $region33: #{parallel_model_forward.5} parent=5 // pred_check
      %p200 = pneg %p199
    $region34: #{parallel_model_forward.5} parent=5 // pred_check_branch
      %202 = sbr.rel (%p200) target = $region36
    $region35: #{parallel_model_forward.5} parent=5 // pred_region
      // Predicated region
      $region37: #{parallel_model_forward.5} parent=35 // pred_check
        %p203 = pneg %p32
      $region38: #{parallel_model_forward.5} parent=35 // pred_check_branch
        %205 = sbr.rel (%p203) target = $region40
      $region39: #{parallel_model_forward.5} parent=35 // pred_region
        %p206 = scmp.lt.s32.totalorder %s12, 1
        %s207 = scalar_select %p206, %s12, 1
        %s208 = smul.addr %s207, 2
        %s209 = smul.addr %s208, 4
        %s210 = scalar_lea.vmem %s0, %s209
      $region40: #{parallel_model_forward.5} parent=35 // pred_fallthru
        _
    $region36: #{parallel_model_forward.5} parent=5 // pred_fallthru
      _
    %p211 = scmp.le.s32.totalorder 1, %s12
    %p212 = scmp.lt.s32.totalorder %s12, 3
    %p213 = pnand %p211, %p212
    %p214 = pneg %p213
    // Predicated region
    $region41: #{parallel_model_forward.5} parent=5 // pred_check
      _
    $region42: #{parallel_model_forward.5} parent=5 // pred_check_branch
      %216 = sbr.rel (%p213) target = $region44
    $region43: #{parallel_model_forward.5} parent=5 // pred_region
      %s217 = ssub.s32 %s12, 1
      %p218 = scmp.lt.s32.totalorder %s17, 1
      %s219 = scalar_select %p218, %s17, 1
      %s220 = smul.addr %s219, 2
      %s221 = smul.addr %s220, 4
      %s222 = scalar_lea.vmem %s0, %s221
      %p223 = pneg %p38
      %p224 = pneg %p35
      %p225 = pneg %p59
      %p226 = pneg %p56
      %p227 = pneg %p80
      %p228 = pneg %p77
      %p229 = pneg %p101
      %p230 = pneg %p98
      %p231 = pneg %p122
      %p232 = pneg %p119
      %p233 = pneg %p143
      %p234 = pneg %p140
      %p235 = pneg %p169
      %p236 = pneg %p166
      %p237 = scmp.lt.s32.totalorder %s17, 1
      %s238 = scalar_select %p237, %s17, 1
      %s239 = smul.addr %s238, 2
      %s240 = smul.addr %s239, 8
      %s241 = scalar_lea.vmem %s6, %s240
      %p242 = scmp.lt.s32.totalorder %s17, 1
      %s243 = scalar_select %p242, %s17, 1
      %s244 = smul.addr %s243, 2
      %s245 = smul.addr %s244, 4
      %s246 = scalar_lea.vmem %s0, %s245
      %p247 = scmp.lt.s32.totalorder %s17, 1
      %s248 = scalar_select %p247, %s17, 1
      %s249 = smul.addr %s248, 2
      %s250 = smul.addr %s249, 8
      %s251 = scalar_lea.vmem %s6, %s250
      %v253 = vld [vmem:[%s246] sm:$0xf]
      %v254 = vld [vmem:[%s246 + $0x4] sm:$0xf]
      %v255 = vld [vmem:[%s1] sm:$0xf]
      %v256 = vld [vmem:[%s1 + $0x4] sm:$0xf]
      %v257 = vld [vmem:[%s1 + $0x8] sm:$0xf]
      %v258 = vld [vmem:[%s1 + $0xc] sm:$0xf]
      %v259 = vld [vmem:[%s2] sm:$0x1]
      %v261 = vlaneseq
      %v262 = vshrl.u32 %v261, 7
      %v263 = vsub.s32 0, %v262
      %v264 = vrot.slane %v259, %v263
      %v268 = vunpack.c.l.b16 %v253
      %v269 = vunpack.c.l.b16 %v254
      %v270 = vpack.c.b16 %v269, %v268
      %v275 = vunpack.c.l.b16 %v255
      %v276 = vunpack.c.l.b16 %v256
      %v277 = vunpack.c.l.b16 %v257
      %v278 = vunpack.c.l.b16 %v258
      %v279 = vpack.c.b16 %v276, %v275
      %v280 = vpack.c.b16 %v278, %v277
      %vm283 = vcmask 261120
      %v285 = vsel %vm283, %v270, 0
      %287 = vmatprep.subr.bf16.mxu0 0
      %288 = vmatpush1.bf16.msra.mxu0 %v279
      %289 = vmatprep.subr.bf16.mxu0 0
      %290 = vmatpush1.bf16.msra.mxu0 %v280
      %291 = vmatprep.subr.bf16.mxu0 0
      %292 = vmatpush1.bf16.msra.mxu0 0
      %293 = vmatprep.subr.bf16.mxu0 0
      %294 = vmatpush1.bf16.msra.mxu0 0
      %295 = vmatprep.subr.bf16.mxu0 0
      %296 = vmatpush1.bf16.msra.mxu0 0
      %297 = vmatprep.subr.bf16.mxu0 0
      %298 = vmatpush1.bf16.msra.mxu0 0
      %299 = vmatprep.subr.bf16.mxu0 0
      %300 = vmatpush1.bf16.msra.mxu0 0
      %301 = vmatprep.subr.bf16.mxu0 0
      %302 = vmatpush1.bf16.msra.mxu0 0
      %303 = vmatprep.subr.bf16.mxu0 0
      %304 = vmatpush1.bf16.msra.mxu0 0
      %305 = vmatprep.subr.bf16.mxu0 0
      %306 = vmatpush1.bf16.msra.mxu0 0
      %307 = vmatprep.subr.bf16.mxu0 0
      %308 = vmatpush1.bf16.msra.mxu0 0
      %309 = vmatprep.subr.bf16.mxu0 0
      %310 = vmatpush1.bf16.msra.mxu0 0
      %311 = vmatprep.subr.bf16.mxu0 0
      %312 = vmatpush1.bf16.msra.mxu0 0
      %313 = vmatprep.subr.bf16.mxu0 0
      %314 = vmatpush1.bf16.msra.mxu0 0
      %315 = vmatprep.subr.bf16.mxu0 0
      %316 = vmatpush1.bf16.msra.mxu0 0
      %317 = vmatprep.subr.bf16.mxu0 0
      %318 = vmatpush1.bf16.msra.mxu0 0
      %319 = vmatprep.mubr.bf16.mxu0 0
      %320 = vmatmul.mubr.bf16.gmra.mrb[0].mxu0 %v285
      %v321 = vpop.f32.mrb[0].mxu0
      %v322 = vadd.f32 %v264, %v321
      %v323 = vpop.f32.mrb[0].mxu0
      %v324 = vpop.f32.mrb[0].mxu0
      %v325 = vadd.f32 %v264, %v324
      %v326 = vpop.f32.mrb[0].mxu0
      %327 = vdwg.mxu0
      %v328 = vpack.c.bf16 %v325, %v322
      %330 = vrot.lane.b32.xlu0 %v328, 112
      %v331 = vpop.permute.xlu0 %330
      %vm332 = vcmask 31744
      %v334 = vsel %vm332, %v328, 0
      %v337 = vsel %vm332, %v331, 0
      %339 = vmatprep.subr.bf16.mxu0 0
      %340 = vmatpush1.bf16.xpose.msra.mxu0 %v337
      %341 = vmatprep.subr.bf16.mxu0 0
      %342 = vmatpush1.bf16.xpose.msra.mxu0 0
      %343 = vmatprep.subr.bf16.mxu0 0
      %344 = vmatpush1.bf16.xpose.msra.mxu0 0
      %345 = vmatprep.subr.bf16.mxu0 0
      %346 = vmatpush1.bf16.xpose.msra.mxu0 0
      %347 = vmatprep.subr.bf16.mxu0 0
      %348 = vmatpush1.bf16.xpose.msra.mxu0 0
      %349 = vmatprep.subr.bf16.mxu0 0
      %350 = vmatpush1.bf16.xpose.msra.mxu0 0
      %351 = vmatprep.subr.bf16.mxu0 0
      %352 = vmatpush1.bf16.xpose.msra.mxu0 0
      %353 = vmatprep.subr.bf16.mxu0 0
      %354 = vmatpush1.bf16.xpose.msra.mxu0 0
      %355 = vmatprep.subr.bf16.mxu0 0
      %356 = vmatpush1.bf16.xpose.msra.mxu0 0
      %357 = vmatprep.subr.bf16.mxu0 0
      %358 = vmatpush1.bf16.xpose.msra.mxu0 0
      %359 = vmatprep.subr.bf16.mxu0 0
      %360 = vmatpush1.bf16.xpose.msra.mxu0 0
      %361 = vmatprep.subr.bf16.mxu0 0
      %362 = vmatpush1.bf16.xpose.msra.mxu0 0
      %363 = vmatprep.subr.bf16.mxu0 0
      %364 = vmatpush1.bf16.xpose.msra.mxu0 0
      %365 = vmatprep.subr.bf16.mxu0 0
      %366 = vmatpush1.bf16.xpose.msra.mxu0 0
      %367 = vmatprep.subr.bf16.mxu0 0
      %368 = vmatpush1.bf16.xpose.msra.mxu0 0
      %369 = vmatprep.subr.bf16.mxu0 0
      %370 = vmatpush1.bf16.xpose.msra.mxu0 0
      %371 = vmatprep.mubr.bf16.mxu0 0
      %372 = vmatmul.mubr.bf16.gmra.mrb[0].mxu0 %v334
      %v373 = vpop.f32.mrb[0].mxu0
      %v374 = vadd.f32 0.0, %v373
      %v375 = vpop.f32.mrb[0].mxu0
      %v376 = vpop.f32.mrb[0].mxu0
      %v377 = vadd.f32 0.0, %v376
      %v378 = vpop.f32.mrb[0].mxu0
      %379 = vdwg.mxu0
      %v380 = vmul.f32 %v374, 0.5
      %v381 = vmul.f32 %v377, 0.5
      %v382 = vld [vmem:[%s5] sm:$0xff]
      %v383 = vld [vmem:[%s5 + $0x8] sm:$0xff]
      %v384 = vadd.f32 %v380, %v382
      %v385 = vadd.f32 %v381, %v383
      %vm386 = vcmask 130048
      %v387 = vsel %vm386, %v384, -inf
      %388 = vmax.xlane.f32.xlu0 %v387
      %v389 = vpop.xlane.xlu0 %388
      %v390 = vsel %vm386, %v385, -inf
      %391 = vmax.xlane.f32.xlu0 %v390
      %v392 = vpop.xlane.xlu0 %391
      %v393 = vsub.f32 %v384, %v389
      %v394 = vsub.f32 %v385, %v392
      %v395 = vmul.f32 %v393, 1.442695
      %v396 = vpow.pop %v395
      %v397 = vmul.f32 %v394, 1.442695
      %v398 = vpow.pop %v397
      %v399 = vsel %vm386, %v396, 0.0
      %400 = vadd.xlane.f32.xlu0 %v399
      %v401 = vpop.xlane.xlu0 %400
      %v402 = vsel %vm386, %v398, 0.0
      %403 = vadd.xlane.f32.xlu0 %v402
      %v404 = vpop.xlane.xlu0 %403
      %v405 = vpack.c.bf16 %v398, %v396
      %406 = vrot.lane.b32.xlu0 %v328, 96
      %v407 = vpop.permute.xlu0 %406
      %v410 = vsel %vm386, %v405, 0
      %412 = vmatprep.subr.bf16.mxu0 0
      %413 = vmatpush1.bf16.msra.mxu0 %v407
      %414 = vmatprep.subr.bf16.mxu0 0
      %415 = vmatpush1.bf16.msra.mxu0 0
      %416 = vmatprep.subr.bf16.mxu0 0
      %417 = vmatpush1.bf16.msra.mxu0 0
      %418 = vmatprep.subr.bf16.mxu0 0
      %419 = vmatpush1.bf16.msra.mxu0 0
      %420 = vmatprep.subr.bf16.mxu0 0
      %421 = vmatpush1.bf16.msra.mxu0 0
      %422 = vmatprep.subr.bf16.mxu0 0
      %423 = vmatpush1.bf16.msra.mxu0 0
      %424 = vmatprep.subr.bf16.mxu0 0
      %425 = vmatpush1.bf16.msra.mxu0 0
      %426 = vmatprep.subr.bf16.mxu0 0
      %427 = vmatpush1.bf16.msra.mxu0 0
      %428 = vmatprep.subr.bf16.mxu0 0
      %429 = vmatpush1.bf16.msra.mxu0 0
      %430 = vmatprep.subr.bf16.mxu0 0
      %431 = vmatpush1.bf16.msra.mxu0 0
      %432 = vmatprep.subr.bf16.mxu0 0
      %433 = vmatpush1.bf16.msra.mxu0 0
      %434 = vmatprep.subr.bf16.mxu0 0
      %435 = vmatpush1.bf16.msra.mxu0 0
      %436 = vmatprep.subr.bf16.mxu0 0
      %437 = vmatpush1.bf16.msra.mxu0 0
      %438 = vmatprep.subr.bf16.mxu0 0
      %439 = vmatpush1.bf16.msra.mxu0 0
      %440 = vmatprep.subr.bf16.mxu0 0
      %441 = vmatpush1.bf16.msra.mxu0 0
      %442 = vmatprep.subr.bf16.mxu0 0
      %443 = vmatpush1.bf16.msra.mxu0 0
      %444 = vmatprep.mubr.bf16.mxu0 0
      %445 = vmatmul.mubr.bf16.gmra.mrb[0].mxu0 %v410
      %v446 = vpop.f32.mrb[0].mxu0
      %v447 = vadd.f32 0.0, %v446
      %v448 = vpop.f32.mrb[0].mxu0
      %v449 = vpop.f32.mrb[0].mxu0
      %v450 = vadd.f32 0.0, %v449
      %v451 = vpop.f32.mrb[0].mxu0
      %452 = vdwg.mxu0
      %v453 = vrcp.pop %v401
      %v454 = vrcp.pop %v404
      %v455 = vmul.f32 %v447, %v453
      %v456 = vmul.f32 %v450, %v454
      %vm457 = vcmask 64512
      %458 = vst.msk [vmem:[#allocation2] sm:$0xff] %vm457, %v455
      %459 = vst.msk [vmem:[#allocation2 + $0x8] sm:$0xff] %vm457, %v456
      %460 = vrot.lane.b32.xlu0 %v328, 124
      %v461 = vpop.permute.xlu0 %460
      %462 = vrot.lane.b32.xlu0 %v328, 108
      %v463 = vpop.permute.xlu0 %462
      %v465 = vsel %vm332, %v461, 0
      %v468 = vsel %vm332, %v463, 0
      %470 = vmatprep.subr.bf16.mxu0 0
      %471 = vmatpush1.bf16.xpose.msra.mxu0 %v468
      %472 = vmatprep.subr.bf16.mxu0 0
      %473 = vmatpush1.bf16.xpose.msra.mxu0 0
      %474 = vmatprep.subr.bf16.mxu0 0
      %475 = vmatpush1.bf16.xpose.msra.mxu0 0
      %476 = vmatprep.subr.bf16.mxu0 0
      %477 = vmatpush1.bf16.xpose.msra.mxu0 0
      %478 = vmatprep.subr.bf16.mxu0 0
      %479 = vmatpush1.bf16.xpose.msra.mxu0 0
      %480 = vmatprep.subr.bf16.mxu0 0
      %481 = vmatpush1.bf16.xpose.msra.mxu0 0
      %482 = vmatprep.subr.bf16.mxu0 0
      %483 = vmatpush1.bf16.xpose.msra.mxu0 0
      %484 = vmatprep.subr.bf16.mxu0 0
      %485 = vmatpush1.bf16.xpose.msra.mxu0 0
      %486 = vmatprep.subr.bf16.mxu0 0
      %487 = vmatpush1.bf16.xpose.msra.mxu0 0
      %488 = vmatprep.subr.bf16.mxu0 0
      %489 = vmatpush1.bf16.xpose.msra.mxu0 0
      %490 = vmatprep.subr.bf16.mxu0 0
      %491 = vmatpush1.bf16.xpose.msra.mxu0 0
      %492 = vmatprep.subr.bf16.mxu0 0
      %493 = vmatpush1.bf16.xpose.msra.mxu0 0
      %494 = vmatprep.subr.bf16.mxu0 0
      %495 = vmatpush1.bf16.xpose.msra.mxu0 0
      %496 = vmatprep.subr.bf16.mxu0 0
      %497 = vmatpush1.bf16.xpose.msra.mxu0 0
      %498 = vmatprep.subr.bf16.mxu0 0
      %499 = vmatpush1.bf16.xpose.msra.mxu0 0
      %500 = vmatprep.subr.bf16.mxu0 0
      %501 = vmatpush1.bf16.xpose.msra.mxu0 0
      %502 = vmatprep.mubr.bf16.mxu0 0
      %503 = vmatmul.mubr.bf16.gmra.mrb[0].mxu0 %v465
      %v504 = vpop.f32.mrb[0].mxu0
      %v505 = vadd.f32 0.0, %v504
      %v506 = vpop.f32.mrb[0].mxu0
      %v507 = vpop.f32.mrb[0].mxu0
      %v508 = vadd.f32 0.0, %v507
      %v509 = vpop.f32.mrb[0].mxu0
      %510 = vdwg.mxu0
      %v511 = vmul.f32 %v505, 0.5
      %v512 = vmul.f32 %v508, 0.5
      %s513 = scalar_lea.vmem %s5, 16
      %v514 = vld [vmem:[%s513] sm:$0xff]
      %v515 = vld [vmem:[%s513 + $0x8] sm:$0xff]
      %v516 = vadd.f32 %v511, %v514
      %v517 = vadd.f32 %v512, %v515
      %v518 = vsel %vm386, %v516, -inf
      %519 = vmax.xlane.f32.xlu0 %v518
      %v520 = vpop.xlane.xlu0 %519
      %v521 = vsel %vm386, %v517, -inf
      %522 = vmax.xlane.f32.xlu0 %v521
      %v523 = vpop.xlane.xlu0 %522
      %v524 = vsub.f32 %v516, %v520
      %v525 = vsub.f32 %v517, %v523
      %v526 = vmul.f32 %v524, 1.442695
      %v527 = vpow.pop %v526
      %v528 = vmul.f32 %v525, 1.442695
      %v529 = vpow.pop %v528
      %v530 = vsel %vm386, %v527, 0.0
      %531 = vadd.xlane.f32.xlu0 %v530
      %v532 = vpop.xlane.xlu0 %531
      %v533 = vsel %vm386, %v529, 0.0
      %534 = vadd.xlane.f32.xlu0 %v533
      %v535 = vpop.xlane.xlu0 %534
      %v536 = vpack.c.bf16 %v529, %v527
      %537 = vrot.lane.b32.xlu0 %v328, 88
      %v538 = vpop.permute.xlu0 %537
      %v541 = vsel %vm386, %v536, 0
      %543 = vmatprep.subr.bf16.mxu0 0
      %544 = vmatpush1.bf16.msra.mxu0 %v538
      %545 = vmatprep.subr.bf16.mxu0 0
      %546 = vmatpush1.bf16.msra.mxu0 0
      %547 = vmatprep.subr.bf16.mxu0 0
      %548 = vmatpush1.bf16.msra.mxu0 0
      %549 = vmatprep.subr.bf16.mxu0 0
      %550 = vmatpush1.bf16.msra.mxu0 0
      %551 = vmatprep.subr.bf16.mxu0 0
      %552 = vmatpush1.bf16.msra.mxu0 0
      %553 = vmatprep.subr.bf16.mxu0 0
      %554 = vmatpush1.bf16.msra.mxu0 0
      %555 = vmatprep.subr.bf16.mxu0 0
      %556 = vmatpush1.bf16.msra.mxu0 0
      %557 = vmatprep.subr.bf16.mxu0 0
      %558 = vmatpush1.bf16.msra.mxu0 0
      %559 = vmatprep.subr.bf16.mxu0 0
      %560 = vmatpush1.bf16.msra.mxu0 0
      %561 = vmatprep.subr.bf16.mxu0 0
      %562 = vmatpush1.bf16.msra.mxu0 0
      %563 = vmatprep.subr.bf16.mxu0 0
      %564 = vmatpush1.bf16.msra.mxu0 0
      %565 = vmatprep.subr.bf16.mxu0 0
      %566 = vmatpush1.bf16.msra.mxu0 0
      %567 = vmatprep.subr.bf16.mxu0 0
      %568 = vmatpush1.bf16.msra.mxu0 0
      %569 = vmatprep.subr.bf16.mxu0 0
      %570 = vmatpush1.bf16.msra.mxu0 0
      %571 = vmatprep.subr.bf16.mxu0 0
      %572 = vmatpush1.bf16.msra.mxu0 0
      %573 = vmatprep.subr.bf16.mxu0 0
      %574 = vmatpush1.bf16.msra.mxu0 0
      %575 = vmatprep.mubr.bf16.mxu0 0
      %576 = vmatmul.mubr.bf16.gmra.mrb[0].mxu0 %v541
      %v577 = vpop.f32.mrb[0].mxu0
      %v578 = vadd.f32 0.0, %v577
      %v579 = vpop.f32.mrb[0].mxu0
      %v580 = vpop.f32.mrb[0].mxu0
      %v581 = vadd.f32 0.0, %v580
      %v582 = vpop.f32.mrb[0].mxu0
      %583 = vdwg.mxu0
      %v584 = vrcp.pop %v532
      %v585 = vrcp.pop %v535
      %v586 = vmul.f32 %v578, %v584
      %v587 = vmul.f32 %v581, %v585
      %590 = vrot.lane.b32.xlu0 %v586, 8
      %v591 = vpop.permute.xlu0 %590
      %592 = vrot.lane.b32.xlu0 %v587, 8
      %v593 = vpop.permute.xlu0 %592
      %vm596 = vcmask 130112
      %597 = vst.msk [vmem:[#allocation2] sm:$0xff] %vm596, %v591
      %598 = vst.msk [vmem:[#allocation2 + $0x8] sm:$0xff] %vm596, %v593
      %599 = vrot.lane.b32.xlu0 %v328, 120
      %v600 = vpop.permute.xlu0 %599
      %601 = vrot.lane.b32.xlu0 %v328, 104
      %v602 = vpop.permute.xlu0 %601
      %v604 = vsel %vm332, %v600, 0
      %v607 = vsel %vm332, %v602, 0
      %609 = vmatprep.subr.bf16.mxu0 0
      %610 = vmatpush1.bf16.xpose.msra.mxu0 %v607
      %611 = vmatprep.subr.bf16.mxu0 0
      %612 = vmatpush1.bf16.xpose.msra.mxu0 0
      %613 = vmatprep.subr.bf16.mxu0 0
      %614 = vmatpush1.bf16.xpose.msra.mxu0 0
      %615 = vmatprep.subr.bf16.mxu0 0
      %616 = vmatpush1.bf16.xpose.msra.mxu0 0
      %617 = vmatprep.subr.bf16.mxu0 0
      %618 = vmatpush1.bf16.xpose.msra.mxu0 0
      %619 = vmatprep.subr.bf16.mxu0 0
      %620 = vmatpush1.bf16.xpose.msra.mxu0 0
      %621 = vmatprep.subr.bf16.mxu0 0
      %622 = vmatpush1.bf16.xpose.msra.mxu0 0
      %623 = vmatprep.subr.bf16.mxu0 0
      %624 = vmatpush1.bf16.xpose.msra.mxu0 0
      %625 = vmatprep.subr.bf16.mxu0 0
      %626 = vmatpush1.bf16.xpose.msra.mxu0 0
      %627 = vmatprep.subr.bf16.mxu0 0
      %628 = vmatpush1.bf16.xpose.msra.mxu0 0
      %629 = vmatprep.subr.bf16.mxu0 0
      %630 = vmatpush1.bf16.xpose.msra.mxu0 0
      %631 = vmatprep.subr.bf16.mxu0 0
      %632 = vmatpush1.bf16.xpose.msra.mxu0 0
      %633 = vmatprep.subr.bf16.mxu0 0
      %634 = vmatpush1.bf16.xpose.msra.mxu0 0
      %635 = vmatprep.subr.bf16.mxu0 0
      %636 = vmatpush1.bf16.xpose.msra.mxu0 0
      %637 = vmatprep.subr.bf16.mxu0 0
      %638 = vmatpush1.bf16.xpose.msra.mxu0 0
      %639 = vmatprep.subr.bf16.mxu0 0
      %640 = vmatpush1.bf16.xpose.msra.mxu0 0
      %641 = vmatprep.mubr.bf16.mxu0 0
      %642 = vmatmul.mubr.bf16.gmra.mrb[0].mxu0 %v604
      %v643 = vpop.f32.mrb[0].mxu0
      %v644 = vadd.f32 0.0, %v643
      %v645 = vpop.f32.mrb[0].mxu0
      %v646 = vpop.f32.mrb[0].mxu0
      %v647 = vadd.f32 0.0, %v646
      %v648 = vpop.f32.mrb[0].mxu0
      %649 = vdwg.mxu0
      %v650 = vmul.f32 %v644, 0.5
      %v651 = vmul.f32 %v647, 0.5
      %s652 = scalar_lea.vmem %s5, 32
      %v653 = vld [vmem:[%s652] sm:$0xff]
      %v654 = vld [vmem:[%s652 + $0x8] sm:$0xff]
      %v655 = vadd.f32 %v650, %v653
      %v656 = vadd.f32 %v651, %v654
      %v657 = vsel %vm386, %v655, -inf
      %658 = vmax.xlane.f32.xlu0 %v657
      %v659 = vpop.xlane.xlu0 %658
      %v660 = vsel %vm386, %v656, -inf
      %661 = vmax.xlane.f32.xlu0 %v660
      %v662 = vpop.xlane.xlu0 %661
      %v663 = vsub.f32 %v655, %v659
      %v664 = vsub.f32 %v656, %v662
      %v665 = vmul.f32 %v663, 1.442695
      %v666 = vpow.pop %v665
      %v667 = vmul.f32 %v664, 1.442695
      %v668 = vpow.pop %v667
      %v669 = vsel %vm386, %v666, 0.0
      %670 = vadd.xlane.f32.xlu0 %v669
      %v671 = vpop.xlane.xlu0 %670
      %v672 = vsel %vm386, %v668, 0.0
      %673 = vadd.xlane.f32.xlu0 %v672
      %v674 = vpop.xlane.xlu0 %673
      %v675 = vpack.c.bf16 %v668, %v666
      %676 = vrot.lane.b32.xlu0 %v328, 80
      %v677 = vpop.permute.xlu0 %676
      %v680 = vsel %vm386, %v675, 0
      %682 = vmatprep.subr.bf16.mxu0 0
      %683 = vmatpush1.bf16.msra.mxu0 %v677
      %684 = vmatprep.subr.bf16.mxu0 0
      %685 = vmatpush1.bf16.msra.mxu0 0
      %686 = vmatprep.subr.bf16.mxu0 0
      %687 = vmatpush1.bf16.msra.mxu0 0
      %688 = vmatprep.subr.bf16.mxu0 0
      %689 = vmatpush1.bf16.msra.mxu0 0
      %690 = vmatprep.subr.bf16.mxu0 0
      %691 = vmatpush1.bf16.msra.mxu0 0
      %692 = vmatprep.subr.bf16.mxu0 0
      %693 = vmatpush1.bf16.msra.mxu0 0
      %694 = vmatprep.subr.bf16.mxu0 0
      %695 = vmatpush1.bf16.msra.mxu0 0
      %696 = vmatprep.subr.bf16.mxu0 0
      %697 = vmatpush1.bf16.msra.mxu0 0
      %698 = vmatprep.subr.bf16.mxu0 0
      %699 = vmatpush1.bf16.msra.mxu0 0
      %700 = vmatprep.subr.bf16.mxu0 0
      %701 = vmatpush1.bf16.msra.mxu0 0
      %702 = vmatprep.subr.bf16.mxu0 0
      %703 = vmatpush1.bf16.msra.mxu0 0
      %704 = vmatprep.subr.bf16.mxu0 0
      %705 = vmatpush1.bf16.msra.mxu0 0
      %706 = vmatprep.subr.bf16.mxu0 0
      %707 = vmatpush1.bf16.msra.mxu0 0
      %708 = vmatprep.subr.bf16.mxu0 0
      %709 = vmatpush1.bf16.msra.mxu0 0
      %710 = vmatprep.subr.bf16.mxu0 0
      %711 = vmatpush1.bf16.msra.mxu0 0
      %712 = vmatprep.subr.bf16.mxu0 0
      %713 = vmatpush1.bf16.msra.mxu0 0
      %714 = vmatprep.mubr.bf16.mxu0 0
      %715 = vmatmul.mubr.bf16.gmra.mrb[0].mxu0 %v680
      %v716 = vpop.f32.mrb[0].mxu0
      %v717 = vadd.f32 0.0, %v716
      %v718 = vpop.f32.mrb[0].mxu0
      %v719 = vpop.f32.mrb[0].mxu0
      %v720 = vadd.f32 0.0, %v719
      %v721 = vpop.f32.mrb[0].mxu0
      %722 = vdwg.mxu0
      %v723 = vrcp.pop %v671
      %v724 = vrcp.pop %v674
      %v725 = vmul.f32 %v717, %v723
      %v726 = vmul.f32 %v720, %v724
      %729 = vrot.lane.b32.xlu0 %v725, 16
      %v730 = vpop.permute.xlu0 %729
      %731 = vrot.lane.b32.xlu0 %v726, 16
      %v732 = vpop.permute.xlu0 %731
      %vm735 = vcmask 195712
      %736 = vst.msk [vmem:[#allocation2] sm:$0xff] %vm735, %v730
      %737 = vst.msk [vmem:[#allocation2 + $0x8] sm:$0xff] %vm735, %v732
      %738 = vrot.lane.b32.xlu0 %v328, 116
      %v739 = vpop.permute.xlu0 %738
      %740 = vrot.lane.b32.xlu0 %v328, 100
      %v741 = vpop.permute.xlu0 %740
      %v743 = vsel %vm332, %v739, 0
      %v746 = vsel %vm332, %v741, 0
      %748 = vmatprep.subr.bf16.mxu0 0
      %749 = vmatpush1.bf16.xpose.msra.mxu0 %v746
      %750 = vmatprep.subr.bf16.mxu0 0
      %751 = vmatpush1.bf16.xpose.msra.mxu0 0
      %752 = vmatprep.subr.bf16.mxu0 0
      %753 = vmatpush1.bf16.xpose.msra.mxu0 0
      %754 = vmatprep.subr.bf16.mxu0 0
      %755 = vmatpush1.bf16.xpose.msra.mxu0 0
      %756 = vmatprep.subr.bf16.mxu0 0
      %757 = vmatpush1.bf16.xpose.msra.mxu0 0
      %758 = vmatprep.subr.bf16.mxu0 0
      %759 = vmatpush1.bf16.xpose.msra.mxu0 0
      %760 = vmatprep.subr.bf16.mxu0 0
      %761 = vmatpush1.bf16.xpose.msra.mxu0 0
      %762 = vmatprep.subr.bf16.mxu0 0
      %763 = vmatpush1.bf16.xpose.msra.mxu0 0
      %764 = vmatprep.subr.bf16.mxu0 0
      %765 = vmatpush1.bf16.xpose.msra.mxu0 0
      %766 = vmatprep.subr.bf16.mxu0 0
      %767 = vmatpush1.bf16.xpose.msra.mxu0 0
      %768 = vmatprep.subr.bf16.mxu0 0
      %769 = vmatpush1.bf16.xpose.msra.mxu0 0
      %770 = vmatprep.subr.bf16.mxu0 0
      %771 = vmatpush1.bf16.xpose.msra.mxu0 0
      %772 = vmatprep.subr.bf16.mxu0 0
      %773 = vmatpush1.bf16.xpose.msra.mxu0 0
      %774 = vmatprep.subr.bf16.mxu0 0
      %775 = vmatpush1.bf16.xpose.msra.mxu0 0
      %776 = vmatprep.subr.bf16.mxu0 0
      %777 = vmatpush1.bf16.xpose.msra.mxu0 0
      %778 = vmatprep.subr.bf16.mxu0 0
      %779 = vmatpush1.bf16.xpose.msra.mxu0 0
      %780 = vmatprep.mubr.bf16.mxu0 0
      %781 = vmatmul.mubr.bf16.gmra.mrb[0].mxu0 %v743
      %v782 = vpop.f32.mrb[0].mxu0
      %v783 = vadd.f32 0.0, %v782
      %v784 = vpop.f32.mrb[0].mxu0
      %v785 = vpop.f32.mrb[0].mxu0
      %v786 = vadd.f32 0.0, %v785
      %v787 = vpop.f32.mrb[0].mxu0
      %788 = vdwg.mxu0
      %v789 = vmul.f32 %v783, 0.5
      %v790 = vmul.f32 %v786, 0.5
      %s791 = scalar_lea.vmem %s5, 48
      %v792 = vld [vmem:[%s791] sm:$0xff]
      %v793 = vld [vmem:[%s791 + $0x8] sm:$0xff]
      %v794 = vadd.f32 %v789, %v792
      %v795 = vadd.f32 %v790, %v793
      %v796 = vsel %vm386, %v794, -inf
      %797 = vmax.xlane.f32.xlu0 %v796
      %v798 = vpop.xlane.xlu0 %797
      %v799 = vsel %vm386, %v795, -inf
      %800 = vmax.xlane.f32.xlu0 %v799
      %v801 = vpop.xlane.xlu0 %800
      %v802 = vsub.f32 %v794, %v798
      %v803 = vsub.f32 %v795, %v801
      %v804 = vmul.f32 %v802, 1.442695
      %v805 = vpow.pop %v804
      %v806 = vmul.f32 %v803, 1.442695
      %v807 = vpow.pop %v806
      %v808 = vsel %vm386, %v805, 0.0
      %809 = vadd.xlane.f32.xlu0 %v808
      %v810 = vpop.xlane.xlu0 %809
      %v811 = vsel %vm386, %v807, 0.0
      %812 = vadd.xlane.f32.xlu0 %v811
      %v813 = vpop.xlane.xlu0 %812
      %v814 = vpack.c.bf16 %v807, %v805
      %815 = vrot.lane.b32.xlu0 %v328, 72
      %v816 = vpop.permute.xlu0 %815
      %v819 = vsel %vm386, %v814, 0
      %821 = vmatprep.subr.bf16.mxu0 0
      %822 = vmatpush1.bf16.msra.mxu0 %v816
      %823 = vmatprep.subr.bf16.mxu0 0
      %824 = vmatpush1.bf16.msra.mxu0 0
      %825 = vmatprep.subr.bf16.mxu0 0
      %826 = vmatpush1.bf16.msra.mxu0 0
      %827 = vmatprep.subr.bf16.mxu0 0
      %828 = vmatpush1.bf16.msra.mxu0 0
      %829 = vmatprep.subr.bf16.mxu0 0
      %830 = vmatpush1.bf16.msra.mxu0 0
      %831 = vmatprep.subr.bf16.mxu0 0
      %832 = vmatpush1.bf16.msra.mxu0 0
      %833 = vmatprep.subr.bf16.mxu0 0
      %834 = vmatpush1.bf16.msra.mxu0 0
      %835 = vmatprep.subr.bf16.mxu0 0
      %836 = vmatpush1.bf16.msra.mxu0 0
      %837 = vmatprep.subr.bf16.mxu0 0
      %838 = vmatpush1.bf16.msra.mxu0 0
      %839 = vmatprep.subr.bf16.mxu0 0
      %840 = vmatpush1.bf16.msra.mxu0 0
      %841 = vmatprep.subr.bf16.mxu0 0
      %842 = vmatpush1.bf16.msra.mxu0 0
      %843 = vmatprep.subr.bf16.mxu0 0
      %844 = vmatpush1.bf16.msra.mxu0 0
      %845 = vmatprep.subr.bf16.mxu0 0
      %846 = vmatpush1.bf16.msra.mxu0 0
      %847 = vmatprep.subr.bf16.mxu0 0
      %848 = vmatpush1.bf16.msra.mxu0 0
      %849 = vmatprep.subr.bf16.mxu0 0
      %850 = vmatpush1.bf16.msra.mxu0 0
      %851 = vmatprep.subr.bf16.mxu0 0
      %852 = vmatpush1.bf16.msra.mxu0 0
      %853 = vmatprep.mubr.bf16.mxu0 0
      %854 = vmatmul.mubr.bf16.gmra.mrb[0].mxu0 %v819
      %v855 = vpop.f32.mrb[0].mxu0
      %v856 = vadd.f32 0.0, %v855
      %v857 = vpop.f32.mrb[0].mxu0
      %v858 = vpop.f32.mrb[0].mxu0
      %v859 = vadd.f32 0.0, %v858
      %v860 = vpop.f32.mrb[0].mxu0
      %861 = vdwg.mxu0
      %v862 = vrcp.pop %v810
      %v863 = vrcp.pop %v813
      %v864 = vmul.f32 %v856, %v862
      %v865 = vmul.f32 %v859, %v863
      %868 = vrot.lane.b32.xlu0 %v864, 24
      %v869 = vpop.permute.xlu0 %868
      %870 = vrot.lane.b32.xlu0 %v865, 24
      %v871 = vpop.permute.xlu0 %870
      %vm874 = vcmask 261312
      %875 = vst.msk [vmem:[#allocation2] sm:$0xff] %vm874, %v869
      %876 = vst.msk [vmem:[#allocation2 + $0x8] sm:$0xff] %vm874, %v871
      %v877 = vld [vmem:[#allocation2] sm:$0xff]
      %v878 = vld [vmem:[#allocation2 + $0x8] sm:$0xff]
      %v879 = vpack.c.bf16 %v878, %v877
      %v880 = vld [vmem:[%s3] sm:$0xf]
      %v881 = vld [vmem:[%s3 + $0x4] sm:$0xf]
      %v882 = vld [vmem:[%s3 + $0x8] sm:$0xf]
      %v883 = vld [vmem:[%s3 + $0xc] sm:$0xf]
      %v884 = vld [vmem:[%s4] sm:$0x1]
      %v886 = vlaneseq
      %v887 = vshrl.u32 %v886, 7
      %v888 = vsub.s32 0, %v887
      %v889 = vrot.slane %v884, %v888
      %v895 = vunpack.c.l.b16 %v880
      %v896 = vunpack.c.l.b16 %v881
      %v897 = vunpack.c.l.b16 %v882
      %v898 = vunpack.c.l.b16 %v883
      %v899 = vpack.c.b16 %v896, %v895
      %v900 = vpack.c.b16 %v898, %v897
      %v904 = vsel %vm283, %v879, 0
      %906 = vmatprep.subr.bf16.mxu0 0
      %907 = vmatpush1.bf16.msra.mxu0 %v899
      %908 = vmatprep.subr.bf16.mxu0 0
      %909 = vmatpush1.bf16.msra.mxu0 %v900
      %910 = vmatprep.subr.bf16.mxu0 0
      %911 = vmatpush1.bf16.msra.mxu0 0
      %912 = vmatprep.subr.bf16.mxu0 0
      %913 = vmatpush1.bf16.msra.mxu0 0
      %914 = vmatprep.subr.bf16.mxu0 0
      %915 = vmatpush1.bf16.msra.mxu0 0
      %916 = vmatprep.subr.bf16.mxu0 0
      %917 = vmatpush1.bf16.msra.mxu0 0
      %918 = vmatprep.subr.bf16.mxu0 0
      %919 = vmatpush1.bf16.msra.mxu0 0
      %920 = vmatprep.subr.bf16.mxu0 0
      %921 = vmatpush1.bf16.msra.mxu0 0
      %922 = vmatprep.subr.bf16.mxu0 0
      %923 = vmatpush1.bf16.msra.mxu0 0
      %924 = vmatprep.subr.bf16.mxu0 0
      %925 = vmatpush1.bf16.msra.mxu0 0
      %926 = vmatprep.subr.bf16.mxu0 0
      %927 = vmatpush1.bf16.msra.mxu0 0
      %928 = vmatprep.subr.bf16.mxu0 0
      %929 = vmatpush1.bf16.msra.mxu0 0
      %930 = vmatprep.subr.bf16.mxu0 0
      %931 = vmatpush1.bf16.msra.mxu0 0
      %932 = vmatprep.subr.bf16.mxu0 0
      %933 = vmatpush1.bf16.msra.mxu0 0
      %934 = vmatprep.subr.bf16.mxu0 0
      %935 = vmatpush1.bf16.msra.mxu0 0
      %936 = vmatprep.subr.bf16.mxu0 0
      %937 = vmatpush1.bf16.msra.mxu0 0
      %938 = vmatprep.mubr.bf16.mxu0 0
      %939 = vmatmul.mubr.bf16.gmra.mrb[0].mxu0 %v904
      %v940 = vpop.f32.mrb[0].mxu0
      %v941 = vadd.f32 %v889, %v940
      %v942 = vpop.f32.mrb[0].mxu0
      %v943 = vpop.f32.mrb[0].mxu0
      %v944 = vadd.f32 %v889, %v943
      %v945 = vpop.f32.mrb[0].mxu0
      %946 = vdwg.mxu0
      %947 = vst.msk [vmem:[%s251] sm:$0xff] %vm283, %v941
      %948 = vst.msk [vmem:[%s251 + $0x8] sm:$0xff] %vm283, %v944
      %p949 = scmp.lt.s32.totalorder %s17, 1
      %s950 = scalar_select %p949, %s17, 1
      %s951 = smul.addr %s950, 2
      %s952 = smul.addr %s951, 8
      %s953 = scalar_lea.vmem %s6, %s952
      // Predicated region
      $region45: #{parallel_model_forward.5} parent=43 // pred_check
        %p954 = pneg %p166
      $region46: #{parallel_model_forward.5} parent=43 // pred_check_branch
        %956 = sbr.rel (%p954) target = $region48
      $region47: #{parallel_model_forward.5} parent=43 // pred_region
        _
      $region48: #{parallel_model_forward.5} parent=43 // pred_fallthru
        _
    $region44: #{parallel_model_forward.5} parent=5 // pred_fallthru
      _
    %p957 = scmp.le.s32.totalorder 2, %s12
    // Predicated region
    $region49: #{parallel_model_forward.5} parent=5 // pred_check
      %p958 = pneg %p957
    $region50: #{parallel_model_forward.5} parent=5 // pred_check_branch
      %960 = sbr.rel (%p958) target = $region52
    $region51: #{parallel_model_forward.5} parent=5 // pred_region
      %s961 = ssub.s32 %s12, 2
      // Predicated region
      $region53: #{parallel_model_forward.5} parent=51 // pred_check
        %p962 = pneg %p172
      $region54: #{parallel_model_forward.5} parent=51 // pred_check_branch
        %964 = sbr.rel (%p962) target = $region56
      $region55: #{parallel_model_forward.5} parent=51 // pred_region
        %p965 = scmp.lt.s32.totalorder %s18, 1
        %s966 = scalar_select %p965, %s18, 1
        %s967 = smul.addr %s966, 2
        %s968 = smul.addr %s967, 8
        %s969 = scalar_lea.vmem %s6, %s968
      $region56: #{parallel_model_forward.5} parent=51 // pred_fallthru
        _
    $region52: #{parallel_model_forward.5} parent=5 // pred_fallthru
      _
  $region6: #{parallel_model_forward.5} parent=0 // loop_footer
    %s16 = sadd.s32 1, %s12
  $region7: #{parallel_model_forward.5} parent=0 // loop_footer_branch
    %11 = sbr.rel target = $region3
  $region8: #{parallel_model_forward.5} parent=0 // loop_exit
    _

</llo_original>
